<compile_context>
chip_gen: v5e
topology: v5e:2x2
jax: 0.10.0
libtpu: 0.0.40
codegen_flags: <defaults>
</compile_context>

<pallas_src>
import jax
import jax.numpy as jnp
from jax.experimental import pallas as pl
from jax.experimental.pallas import tpu as pltpu


def term_scorer_kernel(x_ref, w1_ref, b1_ref, w2_ref, b2_ref, o_ref):
    # Dropout(p=0.1) is identity in eval mode (inference forward pass).
    # TODO(synk): training-mode dropout mask (pltpu.prng_random_bits) not implemented.
    h = jnp.dot(x_ref[...], w1_ref[...], preferred_element_type=jnp.float32)
    h = jnp.maximum(h + b1_ref[...], 0.0)                       # f32 bias + ReLU (VPU)
    logits = jnp.dot(h.astype(jnp.bfloat16), w2_ref[...],
                     preferred_element_type=jnp.float32)
    o_ref[...] = (logits + b2_ref[...]).astype(o_ref.dtype)


def term_scorer(x, w1, b1, w2, b2, *, tm=512):
    """x: (M, D) f32. w1: (D, H), b1: (1, H), w2: (H, C), b2: (1, C). Returns (M, C) f32."""
    M, D = x.shape
    H = w1.shape[1]
    C = w2.shape[1]

    # --- Pad the class dim to a lane-dense 128 so the second matmul + writeback are
    # full-lane; the pad region is zero-filled and sliced off before returning. ---
    C_pad = 128
    w2p = jnp.zeros((H, C_pad), jnp.float32).at[:, :C].set(w2.astype(jnp.float32))
    b2p = jnp.zeros((1, C_pad), jnp.float32).at[:, :C].set(b2.astype(jnp.float32))

    # --- One-time casts for the MXU (bf16 operands, f32 accumulation in-kernel). ---
    xb = x.astype(jnp.bfloat16)
    w1b = w1.astype(jnp.bfloat16)
    w2b = w2p.astype(jnp.bfloat16)
    b1f = b1.astype(jnp.float32)

    # --- Row tile: multiple of 16 (bf16 sublane packing); clamp to the data size and
    # pad rows up to a whole number of tiles (zero rows are harmless and discarded). ---
    tm = ((int(tm) + 15) // 16) * 16
    tm = max(16, min(tm, pl.cdiv(M, 16) * 16))
    m_pad = pl.cdiv(M, tm) * tm
    if m_pad != M:
        xb = jnp.zeros((m_pad, D), xb.dtype).at[:M, :].set(xb)

    out = pl.pallas_call(
        term_scorer_kernel,
        out_shape=jax.ShapeDtypeStruct((m_pad, C_pad), jnp.float32),
        grid_spec=pltpu.PrefetchScalarGridSpec(
            num_scalar_prefetch=0,
            grid=(m_pad // tm,),
            in_specs=[
                pl.BlockSpec((tm, D), lambda i: (i, 0)),      # rows of x (bf16)
                pl.BlockSpec((D, H), lambda i: (0, 0)),       # W1 resident (bf16)
                pl.BlockSpec((1, H), lambda i: (0, 0)),       # b1 (f32)
                pl.BlockSpec((H, C_pad), lambda i: (0, 0)),   # W2 padded (bf16)
                pl.BlockSpec((1, C_pad), lambda i: (0, 0)),   # b2 padded (f32)
            ],
            out_specs=pl.BlockSpec((tm, C_pad), lambda i: (i, 0)),
        ),
        compiler_params=pltpu.CompilerParams(
            dimension_semantics=("parallel",),
        ),
    )(xb, w1b, b1f, w2b, b2p)

    return out[:M, :C]


if __name__ == "__main__":
    # Module-implied sizes: d_hidden=768, hidden=768, num_of_class=3.
    d_hidden, hidden, num_class = 768, 768, 3
    batch, seq = 2, 8                       # small demo -> M = 16 rows

    key = jax.random.PRNGKey(0)
    kx, kw1, kb1, kw2, kb2 = jax.random.split(key, 5)

    x = jax.random.normal(kx, (batch, seq, d_hidden), dtype=jnp.float32)
    # Deterministic synthetic parameters (Linear weight shapes from __init__, transposed).
    w1 = jax.random.normal(kw1, (d_hidden, hidden), dtype=jnp.float32) * 0.02
    b1 = jax.random.normal(kb1, (1, hidden), dtype=jnp.float32) * 0.02
    w2 = jax.random.normal(kw2, (hidden, num_class), dtype=jnp.float32) * 0.02
    b2 = jax.random.normal(kb2, (1, num_class), dtype=jnp.float32) * 0.02

    x2d = x.reshape(batch * seq, d_hidden)
    logits = term_scorer(x2d, w1, b1, w2, b2, tm=512)
    logits = logits.reshape(batch, seq, num_class)
    jax.block_until_ready(logits)

    # Pure-JAX f32 reference; tolerance widened for bf16 MXU operands (f32 accumulate).
    ref = jnp.maximum(x2d @ w1 + b1, 0.0) @ w2 + b2
    ref = ref.reshape(batch, seq, num_class)
    assert logits.shape == ref.shape
    assert jnp.allclose(logits, ref, atol=3e-2, rtol=3e-2), (
        float(jnp.max(jnp.abs(logits - ref))))

    print("KERNEL_OK")
</pallas_src>

<mosaic_0001>
module attributes {stable_mosaic.version = 11 : i64} {
  func.func @term_scorer_kernel(%arg0: i32, %arg1: memref<16x768xbf16, #tpu.memory_space<vmem>>, %arg2: memref<768x768xbf16, #tpu.memory_space<vmem>>, %arg3: memref<1x768xf32, #tpu.memory_space<vmem>>, %arg4: memref<768x128xbf16, #tpu.memory_space<vmem>>, %arg5: memref<1x128xf32, #tpu.memory_space<vmem>>, %arg6: memref<16x128xf32, #tpu.memory_space<vmem>>) attributes {dimension_semantics = [#tpu.dimension_semantics<parallel>], iteration_bounds = array<i64: 1>, scalar_prefetch = 0 : i64, scratch_operands = 0 : i64, tpu.core_type = #tpu.core_type<tc>, window_params = [{transform_indices = @transform_0, window_bounds = array<i64: 16, 768>}, {pipeline_mode = #tpu.pipeline_mode<synchronous>, transform_indices = @transform_1, window_bounds = array<i64: 768, 768>}, {pipeline_mode = #tpu.pipeline_mode<synchronous>, transform_indices = @transform_2, window_bounds = array<i64: 1, 768>}, {pipeline_mode = #tpu.pipeline_mode<synchronous>, transform_indices = @transform_3, window_bounds = array<i64: 768, 128>}, {pipeline_mode = #tpu.pipeline_mode<synchronous>, transform_indices = @transform_4, window_bounds = array<i64: 1, 128>}, {transform_indices = @transform_5, window_bounds = array<i64: 16, 128>}]} {
    %c0 = arith.constant 0 : index
    %c0_0 = arith.constant 0 : index
    %0 = vector.load %arg1[%c0, %c0_0] : memref<16x768xbf16, #tpu.memory_space<vmem>>, vector<16x768xbf16>
    %c0_1 = arith.constant 0 : index
    %c0_2 = arith.constant 0 : index
    %1 = vector.load %arg2[%c0_1, %c0_2] : memref<768x768xbf16, #tpu.memory_space<vmem>>, vector<768x768xbf16>
    %cst = arith.constant dense<0.000000e+00> : vector<16x768xf32>
    %2 = tpu.matmul %0, %1, %cst {dimension_numbers = #tpu.dot_dimension_numbers<[1], [0], [0], [1], [0, 0, 1, 1], [], []>} : vector<16x768xbf16>, vector<768x768xbf16>, vector<16x768xf32> -> vector<16x768xf32>
    %c0_3 = arith.constant 0 : index
    %c0_4 = arith.constant 0 : index
    %3 = vector.load %arg3[%c0_3, %c0_4] : memref<1x768xf32, #tpu.memory_space<vmem>>, vector<1x768xf32>
    %4 = vector.broadcast %3 : vector<1x768xf32> to vector<16x768xf32>
    %5 = arith.addf %2, %4 : vector<16x768xf32>
    %cst_5 = arith.constant 0.000000e+00 : f32
    %6 = vector.broadcast %cst_5 : f32 to vector<16x768xf32>
    %7 = arith.maximumf %5, %6 : vector<16x768xf32>
    %8 = arith.truncf %7 : vector<16x768xf32> to vector<16x768xbf16>
    %c0_6 = arith.constant 0 : index
    %c0_7 = arith.constant 0 : index
    %9 = vector.load %arg4[%c0_6, %c0_7] : memref<768x128xbf16, #tpu.memory_space<vmem>>, vector<768x128xbf16>
    %cst_8 = arith.constant dense<0.000000e+00> : vector<16x128xf32>
    %10 = tpu.matmul %8, %9, %cst_8 {dimension_numbers = #tpu.dot_dimension_numbers<[1], [0], [0], [1], [0, 0, 1, 1], [], []>} : vector<16x768xbf16>, vector<768x128xbf16>, vector<16x128xf32> -> vector<16x128xf32>
    %c0_9 = arith.constant 0 : index
    %c0_10 = arith.constant 0 : index
    %11 = vector.load %arg5[%c0_9, %c0_10] : memref<1x128xf32, #tpu.memory_space<vmem>>, vector<1x128xf32>
    %12 = vector.broadcast %11 : vector<1x128xf32> to vector<16x128xf32>
    %13 = arith.addf %10, %12 : vector<16x128xf32>
    %c0_11 = arith.constant 0 : index
    %c0_12 = arith.constant 0 : index
    %14 = vector.load %arg6[%c0_11, %c0_12] : memref<16x128xf32, #tpu.memory_space<vmem>>, vector<16x128xf32>
    tpu.vector_store %arg6[%c0_11, %c0_12], %13 {strides = array<i32>} : memref<16x128xf32, #tpu.memory_space<vmem>>, vector<16x128xf32>,
    return
  }
  func.func @transform_0(%arg0: i32) -> (i32, i32) {
    %c0_i32 = arith.constant 0 : i32
    %c0_i32_0 = arith.constant 0 : i32
    return %arg0, %c0_i32 : i32, i32
  }
  func.func @transform_1(%arg0: i32) -> (i32, i32) {
    %c0_i32 = arith.constant 0 : i32
    %c0_i32_0 = arith.constant 0 : i32
    %c0_i32_1 = arith.constant 0 : i32
    return %c0_i32, %c0_i32_0 : i32, i32
  }
  func.func @transform_2(%arg0: i32) -> (i32, i32) {
    %c0_i32 = arith.constant 0 : i32
    %c0_i32_0 = arith.constant 0 : i32
    %c0_i32_1 = arith.constant 0 : i32
    return %c0_i32, %c0_i32_0 : i32, i32
  }
  func.func @transform_3(%arg0: i32) -> (i32, i32) {
    %c0_i32 = arith.constant 0 : i32
    %c0_i32_0 = arith.constant 0 : i32
    %c0_i32_1 = arith.constant 0 : i32
    return %c0_i32, %c0_i32_0 : i32, i32
  }
  func.func @transform_4(%arg0: i32) -> (i32, i32) {
    %c0_i32 = arith.constant 0 : i32
    %c0_i32_0 = arith.constant 0 : i32
    %c0_i32_1 = arith.constant 0 : i32
    return %c0_i32, %c0_i32_0 : i32, i32
  }
  func.func @transform_5(%arg0: i32) -> (i32, i32) {
    %c0_i32 = arith.constant 0 : i32
    %c0_i32_0 = arith.constant 0 : i32
    return %arg0, %c0_i32 : i32, i32
  }
}

</mosaic_0001>

<llo_original>
// kernel: tpu_custom_call.1
$region0: #{tpu_custom_call.1}
  #allocation0 [shape = 'u32[]', space=smem, size = 0x4, offset = 0x4, fixed_abs, tag = 'smem constant byte address 0x4 - core index']
  #allocation1 [shape = 'u32[72,128]{1,0:T(1,128)}', space=vmem, size = 0x9000, scoped, tag = 'internal scratch']
  %s0 = inlined_call_operand.hbm [shape: bf16[16,768], index: 0, kind: input, shape index: {}]
  %s1 = inlined_call_operand.hbm [shape: bf16[768,768], index: 1, kind: input, shape index: {}]
  %s2 = inlined_call_operand.hbm [shape: f32[1,768], index: 2, kind: input, shape index: {}]
  %s3 = inlined_call_operand.hbm [shape: bf16[768,128], index: 3, kind: input, shape index: {}]
  %s4 = inlined_call_operand.hbm [shape: f32[1,128], index: 4, kind: input, shape index: {}]
  %s5 = inlined_call_operand.hbm [shape: f32[16,128], index: 5, kind: output, shape index: {}]
  %s6 = sld [smem:[#allocation0]]
  $region50: #{tpu_custom_call.1} parent=0
    _
  %s8 = ssub.s32 1, %s6
  %s9 = scalar_select 0, %s8, %s6
  $region1: #{tpu_custom_call.1} parent=0
    #allocation2 [shape = 'u8[24576]{0}', space=vmem, size = 0x6000, scoped, tag = 'input window, operand 0, single buffered']
    #allocation3 [shape = 's32[1]{0}', space=sflag, size = 0x4, scoped, tag = 'scoped memory for tpu_custom_call.1']
    #allocation4 [shape = 's32[1]{0}', space=sflag, size = 0x4, scoped, tag = 'scoped memory for tpu_custom_call.1']
    #allocation5 [shape = 'u8[1179648]{0}', space=vmem, size = 0x120000, scoped, tag = 'input window, operand 1, single buffered']
    #allocation6 [shape = 's32[1]{0}', space=sflag, size = 0x4, scoped, tag = 'scoped memory for tpu_custom_call.1']
    #allocation7 [shape = 'u8[3072]{0}', space=vmem, size = 0xc00, scoped, tag = 'input window, operand 2, single buffered']
    #allocation8 [shape = 'u8[196608]{0}', space=vmem, size = 0x30000, scoped, tag = 'input window, operand 3, single buffered']
    #allocation9 [shape = 's32[1]{0}', space=sflag, size = 0x4, scoped, tag = 'scoped memory for tpu_custom_call.1']
    #allocation10 [shape = 'u8[512]{0}', space=vmem, size = 0x400, scoped, tag = 'input window, operand 4, single buffered']
    #allocation11 [shape = 'u8[8192]{0}', space=vmem, size = 0x2000, scoped, tag = 'output window, operand 0, single buffered']
    %10 = vsyncpa [#allocation3], 0
    %11 = vsyncpa [#allocation6], 0
    %12 = vsyncpa [#allocation9], 0
    %13 = vsyncpa [#allocation4], 0
    // Predicated region
    $region2: #{tpu_custom_call.1} parent=1 // pred_check
      _
    $region3: #{tpu_custom_call.1} parent=1 // pred_check_branch
      %15 = sbr.rel (0) target = $region5
    $region4: #{tpu_custom_call.1} parent=1 // pred_region
      %17 = vsyncadd [#allocation3], 0
      %s18 = sshll.u32 %s0, 4
      %s19 = int_to_ptr.hbm [resolvable:$true] %s18
      %s20 = sshll.u32 [#allocation2], 4
      %s21 = int_to_ptr.vmem [resolvable:$true] %s20
      %26 = dma.hbm_to_vmem [thread:$0]  %s19, 768, %s21, [#allocation3], 384, 384, 24
    $region5: #{tpu_custom_call.1} parent=1 // pred_fallthru
      _
    // Predicated region
    $region6: #{tpu_custom_call.1} parent=1 // pred_check
      _
    $region7: #{tpu_custom_call.1} parent=1 // pred_check_branch
      %28 = sbr.rel (0) target = $region9
    $region8: #{tpu_custom_call.1} parent=1 // pred_region
      %30 = vsyncadd [#allocation6], 0
      %s31 = sshll.u32 %s1, 4
      %s32 = int_to_ptr.hbm [resolvable:$true] %s31
      %s33 = sshll.u32 [#allocation5], 4
      %s34 = int_to_ptr.vmem [resolvable:$true] %s33
      %39 = dma.hbm_to_vmem [thread:$0]  %s32, 36864, %s34, [#allocation6], 384, 384, 24
    $region9: #{tpu_custom_call.1} parent=1 // pred_fallthru
      _
    // Predicated region
    $region10: #{tpu_custom_call.1} parent=1 // pred_check
      _
    $region11: #{tpu_custom_call.1} parent=1 // pred_check_branch
      %41 = sbr.rel (0) target = $region13
    $region12: #{tpu_custom_call.1} parent=1 // pred_region
      %43 = vsyncadd [#allocation6], 0
      %s45 = sshll.u32 %s2, 4
      %s46 = int_to_ptr.hbm [resolvable:$true] %s45
      %s47 = sshll.u32 [#allocation7], 4
      %s48 = int_to_ptr.vmem [resolvable:$true] %s47
      %50 = dma.hbm_to_vmem [thread:$0]  %s46, 96, %s48, [#allocation6]
    $region13: #{tpu_custom_call.1} parent=1 // pred_fallthru
      _
    // Predicated region
    $region14: #{tpu_custom_call.1} parent=1 // pred_check
      _
    $region15: #{tpu_custom_call.1} parent=1 // pred_check_branch
      %52 = sbr.rel (0) target = $region17
    $region16: #{tpu_custom_call.1} parent=1 // pred_region
      %54 = vsyncadd [#allocation9], 0
      %s55 = sshll.u32 %s3, 4
      %s56 = int_to_ptr.hbm [resolvable:$true] %s55
      %s57 = sshll.u32 [#allocation8], 4
      %s58 = int_to_ptr.vmem [resolvable:$true] %s57
      %63 = dma.hbm_to_vmem [thread:$0]  %s56, 6144, %s58, [#allocation9], 64, 64, 4
    $region17: #{tpu_custom_call.1} parent=1 // pred_fallthru
      _
    // Predicated region
    $region18: #{tpu_custom_call.1} parent=1 // pred_check
      _
    $region19: #{tpu_custom_call.1} parent=1 // pred_check_branch
      %65 = sbr.rel (0) target = $region21
    $region20: #{tpu_custom_call.1} parent=1 // pred_region
      %67 = vsyncadd [#allocation9], 0
      %s69 = sshll.u32 %s4, 4
      %s70 = int_to_ptr.hbm [resolvable:$true] %s69
      %s71 = sshll.u32 [#allocation10], 4
      %s72 = int_to_ptr.vmem [resolvable:$true] %s71
      %74 = dma.hbm_to_vmem [thread:$0]  %s70, 16, %s72, [#allocation9]
    $region21: #{tpu_custom_call.1} parent=1 // pred_fallthru
      _
    // Predicated region
    $region22: #{tpu_custom_call.1} parent=1 // pred_check
      _
    $region23: #{tpu_custom_call.1} parent=1 // pred_check_branch
      %76 = sbr.rel (0) target = $region25
    $region24: #{tpu_custom_call.1} parent=1 // pred_region
      %78 = dma.done [#allocation3], 768
    $region25: #{tpu_custom_call.1} parent=1 // pred_fallthru
      _
    // Predicated region
    $region26: #{tpu_custom_call.1} parent=1 // pred_check
      _
    $region27: #{tpu_custom_call.1} parent=1 // pred_check_branch
      %80 = sbr.rel (0) target = $region29
    $region28: #{tpu_custom_call.1} parent=1 // pred_region
      %82 = dma.done [#allocation6], 36864
    $region29: #{tpu_custom_call.1} parent=1 // pred_fallthru
      _
    // Predicated region
    $region30: #{tpu_custom_call.1} parent=1 // pred_check
      _
    $region31: #{tpu_custom_call.1} parent=1 // pred_check_branch
      %84 = sbr.rel (0) target = $region33
    $region32: #{tpu_custom_call.1} parent=1 // pred_region
      %86 = dma.done [#allocation6], 96
    $region33: #{tpu_custom_call.1} parent=1 // pred_fallthru
      _
    // Predicated region
    $region34: #{tpu_custom_call.1} parent=1 // pred_check
      _
    $region35: #{tpu_custom_call.1} parent=1 // pred_check_branch
      %88 = sbr.rel (0) target = $region37
    $region36: #{tpu_custom_call.1} parent=1 // pred_region
      %90 = dma.done [#allocation9], 6144
    $region37: #{tpu_custom_call.1} parent=1 // pred_fallthru
      _
    // Predicated region
    $region38: #{tpu_custom_call.1} parent=1 // pred_check
      _
    $region39: #{tpu_custom_call.1} parent=1 // pred_check_branch
      %92 = sbr.rel (0) target = $region41
    $region40: #{tpu_custom_call.1} parent=1 // pred_region
      %94 = dma.done [#allocation9], 16
    $region41: #{tpu_custom_call.1} parent=1 // pred_fallthru
      _
    %v95 = vld [vmem:[#allocation2] sm:$0xff]
    %v96 = vld [vmem:[#allocation2 + $0x8] sm:$0xff]
    %v97 = vld [vmem:[#allocation2 + $0x10] sm:$0xff]
    %v98 = vld [vmem:[#allocation2 + $0x18] sm:$0xff]
    %v99 = vld [vmem:[#allocation2 + $0x20] sm:$0xff]
    %v100 = vld [vmem:[#allocation2 + $0x28] sm:$0xff]
    %v101 = vld [vmem:[#allocation5] sm:$0xff]
    %v102 = vld [vmem:[#allocation5 + $0x8] sm:$0xff]
    %v103 = vld [vmem:[#allocation5 + $0x10] sm:$0xff]
    %v104 = vld [vmem:[#allocation5 + $0x18] sm:$0xff]
    %v105 = vld [vmem:[#allocation5 + $0x20] sm:$0xff]
    %v106 = vld [vmem:[#allocation5 + $0x28] sm:$0xff]
    %v107 = vld [vmem:[#allocation5 + $0x30] sm:$0xff]
    %v108 = vld [vmem:[#allocation5 + $0x38] sm:$0xff]
    %v109 = vld [vmem:[#allocation5 + $0x40] sm:$0xff]
    %v110 = vld [vmem:[#allocation5 + $0x48] sm:$0xff]
    %v111 = vld [vmem:[#allocation5 + $0x50] sm:$0xff]
    %v112 = vld [vmem:[#allocation5 + $0x58] sm:$0xff]
    %v113 = vld [vmem:[#allocation5 + $0x60] sm:$0xff]
    %v114 = vld [vmem:[#allocation5 + $0x68] sm:$0xff]
    %v115 = vld [vmem:[#allocation5 + $0x70] sm:$0xff]
    %v116 = vld [vmem:[#allocation5 + $0x78] sm:$0xff]
    %v117 = vld [vmem:[#allocation5 + $0x80] sm:$0xff]
    %v118 = vld [vmem:[#allocation5 + $0x88] sm:$0xff]
    %v119 = vld [vmem:[#allocation5 + $0x90] sm:$0xff]
    %v120 = vld [vmem:[#allocation5 + $0x98] sm:$0xff]
    %v121 = vld [vmem:[#allocation5 + $0xa0] sm:$0xff]
    %v122 = vld [vmem:[#allocation5 + $0xa8] sm:$0xff]
    %v123 = vld [vmem:[#allocation5 + $0xb0] sm:$0xff]
    %v124 = vld [vmem:[#allocation5 + $0xb8] sm:$0xff]
    %v125 = vld [vmem:[#allocation5 + $0xc0] sm:$0xff]
    %v126 = vld [vmem:[#allocation5 + $0xc8] sm:$0xff]
    %v127 = vld [vmem:[#allocation5 + $0xd0] sm:$0xff]
    %v128 = vld [vmem:[#allocation5 + $0xd8] sm:$0xff]
    %v129 = vld [vmem:[#allocation5 + $0xe0] sm:$0xff]
    %v130 = vld [vmem:[#allocation5 + $0xe8] sm:$0xff]
    %v131 = vld [vmem:[#allocation5 + $0xf0] sm:$0xff]
    %v132 = vld [vmem:[#allocation5 + $0xf8] sm:$0xff]
    %v133 = vld [vmem:[#allocation5 + $0x100] sm:$0xff]
    %v134 = vld [vmem:[#allocation5 + $0x108] sm:$0xff]
    %v135 = vld [vmem:[#allocation5 + $0x110] sm:$0xff]
    %v136 = vld [vmem:[#allocation5 + $0x118] sm:$0xff]
    %v137 = vld [vmem:[#allocation5 + $0x120] sm:$0xff]
    %v138 = vld [vmem:[#allocation5 + $0x128] sm:$0xff]
    %v139 = vld [vmem:[#allocation5 + $0x130] sm:$0xff]
    %v140 = vld [vmem:[#allocation5 + $0x138] sm:$0xff]
    %v141 = vld [vmem:[#allocation5 + $0x140] sm:$0xff]
    %v142 = vld [vmem:[#allocation5 + $0x148] sm:$0xff]
    %v143 = vld [vmem:[#allocation5 + $0x150] sm:$0xff]
    %v144 = vld [vmem:[#allocation5 + $0x158] sm:$0xff]
    %v145 = vld [vmem:[#allocation5 + $0x160] sm:$0xff]
    %v146 = vld [vmem:[#allocation5 + $0x168] sm:$0xff]
    %v147 = vld [vmem:[#allocation5 + $0x170] sm:$0xff]
    %v148 = vld [vmem:[#allocation5 + $0x178] sm:$0xff]
    %v149 = vld [vmem:[#allocation5 + $0x180] sm:$0xff]
    %v150 = vld [vmem:[#allocation5 + $0x188] sm:$0xff]
    %v151 = vld [vmem:[#allocation5 + $0x190] sm:$0xff]
    %v152 = vld [vmem:[#allocation5 + $0x198] sm:$0xff]
    %v153 = vld [vmem:[#allocation5 + $0x1a0] sm:$0xff]
    %v154 = vld [vmem:[#allocation5 + $0x1a8] sm:$0xff]
    %v155 = vld [vmem:[#allocation5 + $0x1b0] sm:$0xff]
    %v156 = vld [vmem:[#allocation5 + $0x1b8] sm:$0xff]
    %v157 = vld [vmem:[#allocation5 + $0x1c0] sm:$0xff]
    %v158 = vld [vmem:[#allocation5 + $0x1c8] sm:$0xff]
    %v159 = vld [vmem:[#allocation5 + $0x1d0] sm:$0xff]
    %v160 = vld [vmem:[#allocation5 + $0x1d8] sm:$0xff]
    %v161 = vld [vmem:[#allocation5 + $0x1e0] sm:$0xff]
    %v162 = vld [vmem:[#allocation5 + $0x1e8] sm:$0xff]
    %v163 = vld [vmem:[#allocation5 + $0x1f0] sm:$0xff]
    %v164 = vld [vmem:[#allocation5 + $0x1f8] sm:$0xff]
    %v165 = vld [vmem:[#allocation5 + $0x200] sm:$0xff]
    %v166 = vld [vmem:[#allocation5 + $0x208] sm:$0xff]
    %v167 = vld [vmem:[#allocation5 + $0x210] sm:$0xff]
    %v168 = vld [vmem:[#allocation5 + $0x218] sm:$0xff]
    %v169 = vld [vmem:[#allocation5 + $0x220] sm:$0xff]
    %v170 = vld [vmem:[#allocation5 + $0x228] sm:$0xff]
    %v171 = vld [vmem:[#allocation5 + $0x230] sm:$0xff]
    %v172 = vld [vmem:[#allocation5 + $0x238] sm:$0xff]
    %v173 = vld [vmem:[#allocation5 + $0x240] sm:$0xff]
    %v174 = vld [vmem:[#allocation5 + $0x248] sm:$0xff]
    %v175 = vld [vmem:[#allocation5 + $0x250] sm:$0xff]
    %v176 = vld [vmem:[#allocation5 + $0x258] sm:$0xff]
    %v177 = vld [vmem:[#allocation5 + $0x260] sm:$0xff]
    %v178 = vld [vmem:[#allocation5 + $0x268] sm:$0xff]
    %v179 = vld [vmem:[#allocation5 + $0x270] sm:$0xff]
    %v180 = vld [vmem:[#allocation5 + $0x278] sm:$0xff]
    %v181 = vld [vmem:[#allocation5 + $0x280] sm:$0xff]
    %v182 = vld [vmem:[#allocation5 + $0x288] sm:$0xff]
    %v183 = vld [vmem:[#allocation5 + $0x290] sm:$0xff]
    %v184 = vld [vmem:[#allocation5 + $0x298] sm:$0xff]
    %v185 = vld [vmem:[#allocation5 + $0x2a0] sm:$0xff]
    %v186 = vld [vmem:[#allocation5 + $0x2a8] sm:$0xff]
    %v187 = vld [vmem:[#allocation5 + $0x2b0] sm:$0xff]
    %v188 = vld [vmem:[#allocation5 + $0x2b8] sm:$0xff]
    %v189 = vld [vmem:[#allocation5 + $0x2c0] sm:$0xff]
    %v190 = vld [vmem:[#allocation5 + $0x2c8] sm:$0xff]
    %v191 = vld [vmem:[#allocation5 + $0x2d0] sm:$0xff]
    %v192 = vld [vmem:[#allocation5 + $0x2d8] sm:$0xff]
    %v193 = vld [vmem:[#allocation5 + $0x2e0] sm:$0xff]
    %v194 = vld [vmem:[#allocation5 + $0x2e8] sm:$0xff]
    %v195 = vld [vmem:[#allocation5 + $0x2f0] sm:$0xff]
    %v196 = vld [vmem:[#allocation5 + $0x2f8] sm:$0xff]
    %v197 = vld [vmem:[#allocation5 + $0x300] sm:$0xff]
    %v198 = vld [vmem:[#allocation5 + $0x308] sm:$0xff]
    %v199 = vld [vmem:[#allocation5 + $0x310] sm:$0xff]
    %v200 = vld [vmem:[#allocation5 + $0x318] sm:$0xff]
    %v201 = vld [vmem:[#allocation5 + $0x320] sm:$0xff]
    %v202 = vld [vmem:[#allocation5 + $0x328] sm:$0xff]
    %v203 = vld [vmem:[#allocation5 + $0x330] sm:$0xff]
    %v204 = vld [vmem:[#allocation5 + $0x338] sm:$0xff]
    %v205 = vld [vmem:[#allocation5 + $0x340] sm:$0xff]
    %v206 = vld [vmem:[#allocation5 + $0x348] sm:$0xff]
    %v207 = vld [vmem:[#allocation5 + $0x350] sm:$0xff]
    %v208 = vld [vmem:[#allocation5 + $0x358] sm:$0xff]
    %v209 = vld [vmem:[#allocation5 + $0x360] sm:$0xff]
    %v210 = vld [vmem:[#allocation5 + $0x368] sm:$0xff]
    %v211 = vld [vmem:[#allocation5 + $0x370] sm:$0xff]
    %v212 = vld [vmem:[#allocation5 + $0x378] sm:$0xff]
    %v213 = vld [vmem:[#allocation5 + $0x380] sm:$0xff]
    %v214 = vld [vmem:[#allocation5 + $0x388] sm:$0xff]
    %v215 = vld [vmem:[#allocation5 + $0x390] sm:$0xff]
    %v216 = vld [vmem:[#allocation5 + $0x398] sm:$0xff]
    %v217 = vld [vmem:[#allocation5 + $0x3a0] sm:$0xff]
    %v218 = vld [vmem:[#allocation5 + $0x3a8] sm:$0xff]
    %v219 = vld [vmem:[#allocation5 + $0x3b0] sm:$0xff]
    %v220 = vld [vmem:[#allocation5 + $0x3b8] sm:$0xff]
    %v221 = vld [vmem:[#allocation5 + $0x3c0] sm:$0xff]
    %v222 = vld [vmem:[#allocation5 + $0x3c8] sm:$0xff]
    %v223 = vld [vmem:[#allocation5 + $0x3d0] sm:$0xff]
    %v224 = vld [vmem:[#allocation5 + $0x3d8] sm:$0xff]
    %v225 = vld [vmem:[#allocation5 + $0x3e0] sm:$0xff]
    %v226 = vld [vmem:[#allocation5 + $0x3e8] sm:$0xff]
    %v227 = vld [vmem:[#allocation5 + $0x3f0] sm:$0xff]
    %v228 = vld [vmem:[#allocation5 + $0x3f8] sm:$0xff]
    %v229 = vld [vmem:[#allocation5 + $0x400] sm:$0xff]
    %v230 = vld [vmem:[#allocation5 + $0x408] sm:$0xff]
    %v231 = vld [vmem:[#allocation5 + $0x410] sm:$0xff]
    %v232 = vld [vmem:[#allocation5 + $0x418] sm:$0xff]
    %v233 = vld [vmem:[#allocation5 + $0x420] sm:$0xff]
    %v234 = vld [vmem:[#allocation5 + $0x428] sm:$0xff]
    %v235 = vld [vmem:[#allocation5 + $0x430] sm:$0xff]
    %v236 = vld [vmem:[#allocation5 + $0x438] sm:$0xff]
    %v237 = vld [vmem:[#allocation5 + $0x440] sm:$0xff]
    %v238 = vld [vmem:[#allocation5 + $0x448] sm:$0xff]
    %v239 = vld [vmem:[#allocation5 + $0x450] sm:$0xff]
    %v240 = vld [vmem:[#allocation5 + $0x458] sm:$0xff]
    %v241 = vld [vmem:[#allocation5 + $0x460] sm:$0xff]
    %v242 = vld [vmem:[#allocation5 + $0x468] sm:$0xff]
    %v243 = vld [vmem:[#allocation5 + $0x470] sm:$0xff]
    %v244 = vld [vmem:[#allocation5 + $0x478] sm:$0xff]
    %v245 = vld [vmem:[#allocation5 + $0x480] sm:$0xff]
    %v246 = vld [vmem:[#allocation5 + $0x488] sm:$0xff]
    %v247 = vld [vmem:[#allocation5 + $0x490] sm:$0xff]
    %v248 = vld [vmem:[#allocation5 + $0x498] sm:$0xff]
    %v249 = vld [vmem:[#allocation5 + $0x4a0] sm:$0xff]
    %v250 = vld [vmem:[#allocation5 + $0x4a8] sm:$0xff]
    %v251 = vld [vmem:[#allocation5 + $0x4b0] sm:$0xff]
    %v252 = vld [vmem:[#allocation5 + $0x4b8] sm:$0xff]
    %v253 = vld [vmem:[#allocation5 + $0x4c0] sm:$0xff]
    %v254 = vld [vmem:[#allocation5 + $0x4c8] sm:$0xff]
    %v255 = vld [vmem:[#allocation5 + $0x4d0] sm:$0xff]
    %v256 = vld [vmem:[#allocation5 + $0x4d8] sm:$0xff]
    %v257 = vld [vmem:[#allocation5 + $0x4e0] sm:$0xff]
    %v258 = vld [vmem:[#allocation5 + $0x4e8] sm:$0xff]
    %v259 = vld [vmem:[#allocation5 + $0x4f0] sm:$0xff]
    %v260 = vld [vmem:[#allocation5 + $0x4f8] sm:$0xff]
    %v261 = vld [vmem:[#allocation5 + $0x500] sm:$0xff]
    %v262 = vld [vmem:[#allocation5 + $0x508] sm:$0xff]
    %v263 = vld [vmem:[#allocation5 + $0x510] sm:$0xff]
    %v264 = vld [vmem:[#allocation5 + $0x518] sm:$0xff]
    %v265 = vld [vmem:[#allocation5 + $0x520] sm:$0xff]
    %v266 = vld [vmem:[#allocation5 + $0x528] sm:$0xff]
    %v267 = vld [vmem:[#allocation5 + $0x530] sm:$0xff]
    %v268 = vld [vmem:[#allocation5 + $0x538] sm:$0xff]
    %v269 = vld [vmem:[#allocation5 + $0x540] sm:$0xff]
    %v270 = vld [vmem:[#allocation5 + $0x548] sm:$0xff]
    %v271 = vld [vmem:[#allocation5 + $0x550] sm:$0xff]
    %v272 = vld [vmem:[#allocation5 + $0x558] sm:$0xff]
    %v273 = vld [vmem:[#allocation5 + $0x560] sm:$0xff]
    %v274 = vld [vmem:[#allocation5 + $0x568] sm:$0xff]
    %v275 = vld [vmem:[#allocation5 + $0x570] sm:$0xff]
    %v276 = vld [vmem:[#allocation5 + $0x578] sm:$0xff]
    %v277 = vld [vmem:[#allocation5 + $0x580] sm:$0xff]
    %v278 = vld [vmem:[#allocation5 + $0x588] sm:$0xff]
    %v279 = vld [vmem:[#allocation5 + $0x590] sm:$0xff]
    %v280 = vld [vmem:[#allocation5 + $0x598] sm:$0xff]
    %v281 = vld [vmem:[#allocation5 + $0x5a0] sm:$0xff]
    %v282 = vld [vmem:[#allocation5 + $0x5a8] sm:$0xff]
    %v283 = vld [vmem:[#allocation5 + $0x5b0] sm:$0xff]
    %v284 = vld [vmem:[#allocation5 + $0x5b8] sm:$0xff]
    %v285 = vld [vmem:[#allocation5 + $0x5c0] sm:$0xff]
    %v286 = vld [vmem:[#allocation5 + $0x5c8] sm:$0xff]
    %v287 = vld [vmem:[#allocation5 + $0x5d0] sm:$0xff]
    %v288 = vld [vmem:[#allocation5 + $0x5d8] sm:$0xff]
    %v289 = vld [vmem:[#allocation5 + $0x5e0] sm:$0xff]
    %v290 = vld [vmem:[#allocation5 + $0x5e8] sm:$0xff]
    %v291 = vld [vmem:[#allocation5 + $0x5f0] sm:$0xff]
    %v292 = vld [vmem:[#allocation5 + $0x5f8] sm:$0xff]
    %v293 = vld [vmem:[#allocation5 + $0x600] sm:$0xff]
    %v294 = vld [vmem:[#allocation5 + $0x608] sm:$0xff]
    %v295 = vld [vmem:[#allocation5 + $0x610] sm:$0xff]
    %v296 = vld [vmem:[#allocation5 + $0x618] sm:$0xff]
    %v297 = vld [vmem:[#allocation5 + $0x620] sm:$0xff]
    %v298 = vld [vmem:[#allocation5 + $0x628] sm:$0xff]
    %v299 = vld [vmem:[#allocation5 + $0x630] sm:$0xff]
    %v300 = vld [vmem:[#allocation5 + $0x638] sm:$0xff]
    %v301 = vld [vmem:[#allocation5 + $0x640] sm:$0xff]
    %v302 = vld [vmem:[#allocation5 + $0x648] sm:$0xff]
    %v303 = vld [vmem:[#allocation5 + $0x650] sm:$0xff]
    %v304 = vld [vmem:[#allocation5 + $0x658] sm:$0xff]
    %v305 = vld [vmem:[#allocation5 + $0x660] sm:$0xff]
    %v306 = vld [vmem:[#allocation5 + $0x668] sm:$0xff]
    %v307 = vld [vmem:[#allocation5 + $0x670] sm:$0xff]
    %v308 = vld [vmem:[#allocation5 + $0x678] sm:$0xff]
    %v309 = vld [vmem:[#allocation5 + $0x680] sm:$0xff]
    %v310 = vld [vmem:[#allocation5 + $0x688] sm:$0xff]
    %v311 = vld [vmem:[#allocation5 + $0x690] sm:$0xff]
    %v312 = vld [vmem:[#allocation5 + $0x698] sm:$0xff]
    %v313 = vld [vmem:[#allocation5 + $0x6a0] sm:$0xff]
    %v314 = vld [vmem:[#allocation5 + $0x6a8] sm:$0xff]
    %v315 = vld [vmem:[#allocation5 + $0x6b0] sm:$0xff]
    %v316 = vld [vmem:[#allocation5 + $0x6b8] sm:$0xff]
    %v317 = vld [vmem:[#allocation5 + $0x6c0] sm:$0xff]
    %v318 = vld [vmem:[#allocation5 + $0x6c8] sm:$0xff]
    %v319 = vld [vmem:[#allocation5 + $0x6d0] sm:$0xff]
    %v320 = vld [vmem:[#allocation5 + $0x6d8] sm:$0xff]
    %v321 = vld [vmem:[#allocation5 + $0x6e0] sm:$0xff]
    %v322 = vld [vmem:[#allocation5 + $0x6e8] sm:$0xff]
    %v323 = vld [vmem:[#allocation5 + $0x6f0] sm:$0xff]
    %v324 = vld [vmem:[#allocation5 + $0x6f8] sm:$0xff]
    %v325 = vld [vmem:[#allocation5 + $0x700] sm:$0xff]
    %v326 = vld [vmem:[#allocation5 + $0x708] sm:$0xff]
    %v327 = vld [vmem:[#allocation5 + $0x710] sm:$0xff]
    %v328 = vld [vmem:[#allocation5 + $0x718] sm:$0xff]
    %v329 = vld [vmem:[#allocation5 + $0x720] sm:$0xff]
    %v330 = vld [vmem:[#allocation5 + $0x728] sm:$0xff]
    %v331 = vld [vmem:[#allocation5 + $0x730] sm:$0xff]
    %v332 = vld [vmem:[#allocation5 + $0x738] sm:$0xff]
    %v333 = vld [vmem:[#allocation5 + $0x740] sm:$0xff]
    %v334 = vld [vmem:[#allocation5 + $0x748] sm:$0xff]
    %v335 = vld [vmem:[#allocation5 + $0x750] sm:$0xff]
    %v336 = vld [vmem:[#allocation5 + $0x758] sm:$0xff]
    %v337 = vld [vmem:[#allocation5 + $0x760] sm:$0xff]
    %v338 = vld [vmem:[#allocation5 + $0x768] sm:$0xff]
    %v339 = vld [vmem:[#allocation5 + $0x770] sm:$0xff]
    %v340 = vld [vmem:[#allocation5 + $0x778] sm:$0xff]
    %v341 = vld [vmem:[#allocation5 + $0x780] sm:$0xff]
    %v342 = vld [vmem:[#allocation5 + $0x788] sm:$0xff]
    %v343 = vld [vmem:[#allocation5 + $0x790] sm:$0xff]
    %v344 = vld [vmem:[#allocation5 + $0x798] sm:$0xff]
    %v345 = vld [vmem:[#allocation5 + $0x7a0] sm:$0xff]
    %v346 = vld [vmem:[#allocation5 + $0x7a8] sm:$0xff]
    %v347 = vld [vmem:[#allocation5 + $0x7b0] sm:$0xff]
    %v348 = vld [vmem:[#allocation5 + $0x7b8] sm:$0xff]
    %v349 = vld [vmem:[#allocation5 + $0x7c0] sm:$0xff]
    %v350 = vld [vmem:[#allocation5 + $0x7c8] sm:$0xff]
    %v351 = vld [vmem:[#allocation5 + $0x7d0] sm:$0xff]
    %v352 = vld [vmem:[#allocation5 + $0x7d8] sm:$0xff]
    %v353 = vld [vmem:[#allocation5 + $0x7e0] sm:$0xff]
    %v354 = vld [vmem:[#allocation5 + $0x7e8] sm:$0xff]
    %v355 = vld [vmem:[#allocation5 + $0x7f0] sm:$0xff]
    %v356 = vld [vmem:[#allocation5 + $0x7f8] sm:$0xff]
    %v357 = vld [vmem:[#allocation5 + $0x800] sm:$0xff]
    %v358 = vld [vmem:[#allocation5 + $0x808] sm:$0xff]
    %v359 = vld [vmem:[#allocation5 + $0x810] sm:$0xff]
    %v360 = vld [vmem:[#allocation5 + $0x818] sm:$0xff]
    %v361 = vld [vmem:[#allocation5 + $0x820] sm:$0xff]
    %v362 = vld [vmem:[#allocation5 + $0x828] sm:$0xff]
    %v363 = vld [vmem:[#allocation5 + $0x830] sm:$0xff]
    %v364 = vld [vmem:[#allocation5 + $0x838] sm:$0xff]
    %v365 = vld [vmem:[#allocation5 + $0x840] sm:$0xff]
    %v366 = vld [vmem:[#allocation5 + $0x848] sm:$0xff]
    %v367 = vld [vmem:[#allocation5 + $0x850] sm:$0xff]
    %v368 = vld [vmem:[#allocation5 + $0x858] sm:$0xff]
    %v369 = vld [vmem:[#allocation5 + $0x860] sm:$0xff]
    %v370 = vld [vmem:[#allocation5 + $0x868] sm:$0xff]
    %v371 = vld [vmem:[#allocation5 + $0x870] sm:$0xff]
    %v372 = vld [vmem:[#allocation5 + $0x878] sm:$0xff]
    %v373 = vld [vmem:[#allocation5 + $0x880] sm:$0xff]
    %v374 = vld [vmem:[#allocation5 + $0x888] sm:$0xff]
    %v375 = vld [vmem:[#allocation5 + $0x890] sm:$0xff]
    %v376 = vld [vmem:[#allocation5 + $0x898] sm:$0xff]
    %v377 = vld [vmem:[#allocation5 + $0x8a0] sm:$0xff]
    %v378 = vld [vmem:[#allocation5 + $0x8a8] sm:$0xff]
    %v379 = vld [vmem:[#allocation5 + $0x8b0] sm:$0xff]
    %v380 = vld [vmem:[#allocation5 + $0x8b8] sm:$0xff]
    %v381 = vld [vmem:[#allocation5 + $0x8c0] sm:$0xff]
    %v382 = vld [vmem:[#allocation5 + $0x8c8] sm:$0xff]
    %v383 = vld [vmem:[#allocation5 + $0x8d0] sm:$0xff]
    %v384 = vld [vmem:[#allocation5 + $0x8d8] sm:$0xff]
    %v385 = vld [vmem:[#allocation5 + $0x8e0] sm:$0xff]
    %v386 = vld [vmem:[#allocation5 + $0x8e8] sm:$0xff]
    %v387 = vld [vmem:[#allocation5 + $0x8f0] sm:$0xff]
    %v388 = vld [vmem:[#allocation5 + $0x8f8] sm:$0xff]
    %v389 = vld [vmem:[#allocation7] sm:$0x3f]
    %v391 = vperm.slane %v389, 0
    %v392 = vperm.slane %v389, 1
    %v393 = vperm.slane %v389, 2
    %v394 = vperm.slane %v389, 3
    %v395 = vperm.slane %v389, 4
    %v396 = vperm.slane %v389, 5
    %v409 = vunpack.c.l.b16 %v95
    %v410 = vunpack.c.h.b16 %v95
    %v411 = vunpack.c.l.b16 %v96
    %v412 = vunpack.c.h.b16 %v96
    %v413 = vunpack.c.l.b16 %v97
    %v414 = vunpack.c.h.b16 %v97
    %v415 = vunpack.c.l.b16 %v98
    %v416 = vunpack.c.h.b16 %v98
    %v417 = vunpack.c.l.b16 %v99
    %v418 = vunpack.c.h.b16 %v99
    %v419 = vunpack.c.l.b16 %v100
    %v420 = vunpack.c.h.b16 %v100
    %v421 = vpack.c.b16 %v415, %v409
    %v422 = vpack.c.b16 %v416, %v410
    %v423 = vpack.c.b16 %v417, %v411
    %v424 = vpack.c.b16 %v418, %v412
    %v425 = vpack.c.b16 %v419, %v413
    %v426 = vpack.c.b16 %v420, %v414
    %v721 = vunpack.c.l.b16 %v101
    %v722 = vunpack.c.h.b16 %v101
    %v723 = vunpack.c.l.b16 %v102
    %v724 = vunpack.c.h.b16 %v102
    %v725 = vunpack.c.l.b16 %v103
    %v726 = vunpack.c.h.b16 %v103
    %v727 = vunpack.c.l.b16 %v104
    %v728 = vunpack.c.h.b16 %v104
    %v729 = vunpack.c.l.b16 %v105
    %v730 = vunpack.c.h.b16 %v105
    %v731 = vunpack.c.l.b16 %v106
    %v732 = vunpack.c.h.b16 %v106
    %v733 = vunpack.c.l.b16 %v107
    %v734 = vunpack.c.h.b16 %v107
    %v735 = vunpack.c.l.b16 %v108
    %v736 = vunpack.c.h.b16 %v108
    %v737 = vunpack.c.l.b16 %v109
    %v738 = vunpack.c.h.b16 %v109
    %v739 = vunpack.c.l.b16 %v110
    %v740 = vunpack.c.h.b16 %v110
    %v741 = vunpack.c.l.b16 %v111
    %v742 = vunpack.c.h.b16 %v111
    %v743 = vunpack.c.l.b16 %v112
    %v744 = vunpack.c.h.b16 %v112
    %v745 = vunpack.c.l.b16 %v113
    %v746 = vunpack.c.h.b16 %v113
    %v747 = vunpack.c.l.b16 %v114
    %v748 = vunpack.c.h.b16 %v114
    %v749 = vunpack.c.l.b16 %v115
    %v750 = vunpack.c.h.b16 %v115
    %v751 = vunpack.c.l.b16 %v116
    %v752 = vunpack.c.h.b16 %v116
    %v753 = vunpack.c.l.b16 %v117
    %v754 = vunpack.c.h.b16 %v117
    %v755 = vunpack.c.l.b16 %v118
    %v756 = vunpack.c.h.b16 %v118
    %v757 = vunpack.c.l.b16 %v119
    %v758 = vunpack.c.h.b16 %v119
    %v759 = vunpack.c.l.b16 %v120
    %v760 = vunpack.c.h.b16 %v120
    %v761 = vunpack.c.l.b16 %v121
    %v762 = vunpack.c.h.b16 %v121
    %v763 = vunpack.c.l.b16 %v122
    %v764 = vunpack.c.h.b16 %v122
    %v765 = vunpack.c.l.b16 %v123
    %v766 = vunpack.c.h.b16 %v123
    %v767 = vunpack.c.l.b16 %v124
    %v768 = vunpack.c.h.b16 %v124
    %v769 = vunpack.c.l.b16 %v125
    %v770 = vunpack.c.h.b16 %v125
    %v771 = vunpack.c.l.b16 %v126
    %v772 = vunpack.c.h.b16 %v126
    %v773 = vunpack.c.l.b16 %v127
    %v774 = vunpack.c.h.b16 %v127
    %v775 = vunpack.c.l.b16 %v128
    %v776 = vunpack.c.h.b16 %v128
    %v777 = vunpack.c.l.b16 %v129
    %v778 = vunpack.c.h.b16 %v129
    %v779 = vunpack.c.l.b16 %v130
    %v780 = vunpack.c.h.b16 %v130
    %v781 = vunpack.c.l.b16 %v131
    %v782 = vunpack.c.h.b16 %v131
    %v783 = vunpack.c.l.b16 %v132
    %v784 = vunpack.c.h.b16 %v132
    %v785 = vunpack.c.l.b16 %v133
    %v786 = vunpack.c.h.b16 %v133
    %v787 = vunpack.c.l.b16 %v134
    %v788 = vunpack.c.h.b16 %v134
    %v789 = vunpack.c.l.b16 %v135
    %v790 = vunpack.c.h.b16 %v135
    %v791 = vunpack.c.l.b16 %v136
    %v792 = vunpack.c.h.b16 %v136
    %v793 = vunpack.c.l.b16 %v137
    %v794 = vunpack.c.h.b16 %v137
    %v795 = vunpack.c.l.b16 %v138
    %v796 = vunpack.c.h.b16 %v138
    %v797 = vunpack.c.l.b16 %v139
    %v798 = vunpack.c.h.b16 %v139
    %v799 = vunpack.c.l.b16 %v140
    %v800 = vunpack.c.h.b16 %v140
    %v801 = vunpack.c.l.b16 %v141
    %v802 = vunpack.c.h.b16 %v141
    %v803 = vunpack.c.l.b16 %v142
    %v804 = vunpack.c.h.b16 %v142
    %v805 = vunpack.c.l.b16 %v143
    %v806 = vunpack.c.h.b16 %v143
    %v807 = vunpack.c.l.b16 %v144
    %v808 = vunpack.c.h.b16 %v144
    %v809 = vunpack.c.l.b16 %v145
    %v810 = vunpack.c.h.b16 %v145
    %v811 = vunpack.c.l.b16 %v146
    %v812 = vunpack.c.h.b16 %v146
    %v813 = vunpack.c.l.b16 %v147
    %v814 = vunpack.c.h.b16 %v147
    %v815 = vunpack.c.l.b16 %v148
    %v816 = vunpack.c.h.b16 %v148
    %v817 = vunpack.c.l.b16 %v149
    %v818 = vunpack.c.h.b16 %v149
    %v819 = vunpack.c.l.b16 %v150
    %v820 = vunpack.c.h.b16 %v150
    %v821 = vunpack.c.l.b16 %v151
    %v822 = vunpack.c.h.b16 %v151
    %v823 = vunpack.c.l.b16 %v152
    %v824 = vunpack.c.h.b16 %v152
    %v825 = vunpack.c.l.b16 %v153
    %v826 = vunpack.c.h.b16 %v153
    %v827 = vunpack.c.l.b16 %v154
    %v828 = vunpack.c.h.b16 %v154
    %v829 = vunpack.c.l.b16 %v155
    %v830 = vunpack.c.h.b16 %v155
    %v831 = vunpack.c.l.b16 %v156
    %v832 = vunpack.c.h.b16 %v156
    %v833 = vunpack.c.l.b16 %v157
    %v834 = vunpack.c.h.b16 %v157
    %v835 = vunpack.c.l.b16 %v158
    %v836 = vunpack.c.h.b16 %v158
    %v837 = vunpack.c.l.b16 %v159
    %v838 = vunpack.c.h.b16 %v159
    %v839 = vunpack.c.l.b16 %v160
    %v840 = vunpack.c.h.b16 %v160
    %v841 = vunpack.c.l.b16 %v161
    %v842 = vunpack.c.h.b16 %v161
    %v843 = vunpack.c.l.b16 %v162
    %v844 = vunpack.c.h.b16 %v162
    %v845 = vunpack.c.l.b16 %v163
    %v846 = vunpack.c.h.b16 %v163
    %v847 = vunpack.c.l.b16 %v164
    %v848 = vunpack.c.h.b16 %v164
    %v849 = vunpack.c.l.b16 %v165
    %v850 = vunpack.c.h.b16 %v165
    %v851 = vunpack.c.l.b16 %v166
    %v852 = vunpack.c.h.b16 %v166
    %v853 = vunpack.c.l.b16 %v167
    %v854 = vunpack.c.h.b16 %v167
    %v855 = vunpack.c.l.b16 %v168
    %v856 = vunpack.c.h.b16 %v168
    %v857 = vunpack.c.l.b16 %v169
    %v858 = vunpack.c.h.b16 %v169
    %v859 = vunpack.c.l.b16 %v170
    %v860 = vunpack.c.h.b16 %v170
    %v861 = vunpack.c.l.b16 %v171
    %v862 = vunpack.c.h.b16 %v171
    %v863 = vunpack.c.l.b16 %v172
    %v864 = vunpack.c.h.b16 %v172
    %v865 = vunpack.c.l.b16 %v173
    %v866 = vunpack.c.h.b16 %v173
    %v867 = vunpack.c.l.b16 %v174
    %v868 = vunpack.c.h.b16 %v174
    %v869 = vunpack.c.l.b16 %v175
    %v870 = vunpack.c.h.b16 %v175
    %v871 = vunpack.c.l.b16 %v176
    %v872 = vunpack.c.h.b16 %v176
    %v873 = vunpack.c.l.b16 %v177
    %v874 = vunpack.c.h.b16 %v177
    %v875 = vunpack.c.l.b16 %v178
    %v876 = vunpack.c.h.b16 %v178
    %v877 = vunpack.c.l.b16 %v179
    %v878 = vunpack.c.h.b16 %v179
    %v879 = vunpack.c.l.b16 %v180
    %v880 = vunpack.c.h.b16 %v180
    %v881 = vunpack.c.l.b16 %v181
    %v882 = vunpack.c.h.b16 %v181
    %v883 = vunpack.c.l.b16 %v182
    %v884 = vunpack.c.h.b16 %v182
    %v885 = vunpack.c.l.b16 %v183
    %v886 = vunpack.c.h.b16 %v183
    %v887 = vunpack.c.l.b16 %v184
    %v888 = vunpack.c.h.b16 %v184
    %v889 = vunpack.c.l.b16 %v185
    %v890 = vunpack.c.h.b16 %v185
    %v891 = vunpack.c.l.b16 %v186
    %v892 = vunpack.c.h.b16 %v186
    %v893 = vunpack.c.l.b16 %v187
    %v894 = vunpack.c.h.b16 %v187
    %v895 = vunpack.c.l.b16 %v188
    %v896 = vunpack.c.h.b16 %v188
    %v897 = vunpack.c.l.b16 %v189
    %v898 = vunpack.c.h.b16 %v189
    %v899 = vunpack.c.l.b16 %v190
    %v900 = vunpack.c.h.b16 %v190
    %v901 = vunpack.c.l.b16 %v191
    %v902 = vunpack.c.h.b16 %v191
    %v903 = vunpack.c.l.b16 %v192
    %v904 = vunpack.c.h.b16 %v192
    %v905 = vunpack.c.l.b16 %v193
    %v906 = vunpack.c.h.b16 %v193
    %v907 = vunpack.c.l.b16 %v194
    %v908 = vunpack.c.h.b16 %v194
    %v909 = vunpack.c.l.b16 %v195
    %v910 = vunpack.c.h.b16 %v195
    %v911 = vunpack.c.l.b16 %v196
    %v912 = vunpack.c.h.b16 %v196
    %v913 = vunpack.c.l.b16 %v197
    %v914 = vunpack.c.h.b16 %v197
    %v915 = vunpack.c.l.b16 %v198
    %v916 = vunpack.c.h.b16 %v198
    %v917 = vunpack.c.l.b16 %v199
    %v918 = vunpack.c.h.b16 %v199
    %v919 = vunpack.c.l.b16 %v200
    %v920 = vunpack.c.h.b16 %v200
    %v921 = vunpack.c.l.b16 %v201
    %v922 = vunpack.c.h.b16 %v201
    %v923 = vunpack.c.l.b16 %v202
    %v924 = vunpack.c.h.b16 %v202
    %v925 = vunpack.c.l.b16 %v203
    %v926 = vunpack.c.h.b16 %v203
    %v927 = vunpack.c.l.b16 %v204
    %v928 = vunpack.c.h.b16 %v204
    %v929 = vunpack.c.l.b16 %v205
    %v930 = vunpack.c.h.b16 %v205
    %v931 = vunpack.c.l.b16 %v206
    %v932 = vunpack.c.h.b16 %v206
    %v933 = vunpack.c.l.b16 %v207
    %v934 = vunpack.c.h.b16 %v207
    %v935 = vunpack.c.l.b16 %v208
    %v936 = vunpack.c.h.b16 %v208
    %v937 = vunpack.c.l.b16 %v209
    %v938 = vunpack.c.h.b16 %v209
    %v939 = vunpack.c.l.b16 %v210
    %v940 = vunpack.c.h.b16 %v210
    %v941 = vunpack.c.l.b16 %v211
    %v942 = vunpack.c.h.b16 %v211
    %v943 = vunpack.c.l.b16 %v212
    %v944 = vunpack.c.h.b16 %v212
    %v945 = vunpack.c.l.b16 %v213
    %v946 = vunpack.c.h.b16 %v213
    %v947 = vunpack.c.l.b16 %v214
    %v948 = vunpack.c.h.b16 %v214
    %v949 = vunpack.c.l.b16 %v215
    %v950 = vunpack.c.h.b16 %v215
    %v951 = vunpack.c.l.b16 %v216
    %v952 = vunpack.c.h.b16 %v216
    %v953 = vunpack.c.l.b16 %v217
    %v954 = vunpack.c.h.b16 %v217
    %v955 = vunpack.c.l.b16 %v218
    %v956 = vunpack.c.h.b16 %v218
    %v957 = vunpack.c.l.b16 %v219
    %v958 = vunpack.c.h.b16 %v219
    %v959 = vunpack.c.l.b16 %v220
    %v960 = vunpack.c.h.b16 %v220
    %v961 = vunpack.c.l.b16 %v221
    %v962 = vunpack.c.h.b16 %v221
    %v963 = vunpack.c.l.b16 %v222
    %v964 = vunpack.c.h.b16 %v222
    %v965 = vunpack.c.l.b16 %v223
    %v966 = vunpack.c.h.b16 %v223
    %v967 = vunpack.c.l.b16 %v224
    %v968 = vunpack.c.h.b16 %v224
    %v969 = vunpack.c.l.b16 %v225
    %v970 = vunpack.c.h.b16 %v225
    %v971 = vunpack.c.l.b16 %v226
    %v972 = vunpack.c.h.b16 %v226
    %v973 = vunpack.c.l.b16 %v227
    %v974 = vunpack.c.h.b16 %v227
    %v975 = vunpack.c.l.b16 %v228
    %v976 = vunpack.c.h.b16 %v228
    %v977 = vunpack.c.l.b16 %v229
    %v978 = vunpack.c.h.b16 %v229
    %v979 = vunpack.c.l.b16 %v230
    %v980 = vunpack.c.h.b16 %v230
    %v981 = vunpack.c.l.b16 %v231
    %v982 = vunpack.c.h.b16 %v231
    %v983 = vunpack.c.l.b16 %v232
    %v984 = vunpack.c.h.b16 %v232
    %v985 = vunpack.c.l.b16 %v233
    %v986 = vunpack.c.h.b16 %v233
    %v987 = vunpack.c.l.b16 %v234
    %v988 = vunpack.c.h.b16 %v234
    %v989 = vunpack.c.l.b16 %v235
    %v990 = vunpack.c.h.b16 %v235
    %v991 = vunpack.c.l.b16 %v236
    %v992 = vunpack.c.h.b16 %v236
    %v993 = vunpack.c.l.b16 %v237
    %v994 = vunpack.c.h.b16 %v237
    %v995 = vunpack.c.l.b16 %v238
    %v996 = vunpack.c.h.b16 %v238
    %v997 = vunpack.c.l.b16 %v239
    %v998 = vunpack.c.h.b16 %v239
    %v999 = vunpack.c.l.b16 %v240
    %v1000 = vunpack.c.h.b16 %v240
    %v1001 = vunpack.c.l.b16 %v241
    %v1002 = vunpack.c.h.b16 %v241
    %v1003 = vunpack.c.l.b16 %v242
    %v1004 = vunpack.c.h.b16 %v242
    %v1005 = vunpack.c.l.b16 %v243
    %v1006 = vunpack.c.h.b16 %v243
    %v1007 = vunpack.c.l.b16 %v244
    %v1008 = vunpack.c.h.b16 %v244
    %v1009 = vunpack.c.l.b16 %v245
    %v1010 = vunpack.c.h.b16 %v245
    %v1011 = vunpack.c.l.b16 %v246
    %v1012 = vunpack.c.h.b16 %v246
    %v1013 = vunpack.c.l.b16 %v247
    %v1014 = vunpack.c.h.b16 %v247
    %v1015 = vunpack.c.l.b16 %v248
    %v1016 = vunpack.c.h.b16 %v248
    %v1017 = vunpack.c.l.b16 %v249
    %v1018 = vunpack.c.h.b16 %v249
    %v1019 = vunpack.c.l.b16 %v250
    %v1020 = vunpack.c.h.b16 %v250
    %v1021 = vunpack.c.l.b16 %v251
    %v1022 = vunpack.c.h.b16 %v251
    %v1023 = vunpack.c.l.b16 %v252
    %v1024 = vunpack.c.h.b16 %v252
    %v1025 = vunpack.c.l.b16 %v253
    %v1026 = vunpack.c.h.b16 %v253
    %v1027 = vunpack.c.l.b16 %v254
    %v1028 = vunpack.c.h.b16 %v254
    %v1029 = vunpack.c.l.b16 %v255
    %v1030 = vunpack.c.h.b16 %v255
    %v1031 = vunpack.c.l.b16 %v256
    %v1032 = vunpack.c.h.b16 %v256
    %v1033 = vunpack.c.l.b16 %v257
    %v1034 = vunpack.c.h.b16 %v257
    %v1035 = vunpack.c.l.b16 %v258
    %v1036 = vunpack.c.h.b16 %v258
    %v1037 = vunpack.c.l.b16 %v259
    %v1038 = vunpack.c.h.b16 %v259
    %v1039 = vunpack.c.l.b16 %v260
    %v1040 = vunpack.c.h.b16 %v260
    %v1041 = vunpack.c.l.b16 %v261
    %v1042 = vunpack.c.h.b16 %v261
    %v1043 = vunpack.c.l.b16 %v262
    %v1044 = vunpack.c.h.b16 %v262
    %v1045 = vunpack.c.l.b16 %v263
    %v1046 = vunpack.c.h.b16 %v263
    %v1047 = vunpack.c.l.b16 %v264
    %v1048 = vunpack.c.h.b16 %v264
    %v1049 = vunpack.c.l.b16 %v265
    %v1050 = vunpack.c.h.b16 %v265
    %v1051 = vunpack.c.l.b16 %v266
    %v1052 = vunpack.c.h.b16 %v266
    %v1053 = vunpack.c.l.b16 %v267
    %v1054 = vunpack.c.h.b16 %v267
    %v1055 = vunpack.c.l.b16 %v268
    %v1056 = vunpack.c.h.b16 %v268
    %v1057 = vunpack.c.l.b16 %v269
    %v1058 = vunpack.c.h.b16 %v269
    %v1059 = vunpack.c.l.b16 %v270
    %v1060 = vunpack.c.h.b16 %v270
    %v1061 = vunpack.c.l.b16 %v271
    %v1062 = vunpack.c.h.b16 %v271
    %v1063 = vunpack.c.l.b16 %v272
    %v1064 = vunpack.c.h.b16 %v272
    %v1065 = vunpack.c.l.b16 %v273
    %v1066 = vunpack.c.h.b16 %v273
    %v1067 = vunpack.c.l.b16 %v274
    %v1068 = vunpack.c.h.b16 %v274
    %v1069 = vunpack.c.l.b16 %v275
    %v1070 = vunpack.c.h.b16 %v275
    %v1071 = vunpack.c.l.b16 %v276
    %v1072 = vunpack.c.h.b16 %v276
    %v1073 = vunpack.c.l.b16 %v277
    %v1074 = vunpack.c.h.b16 %v277
    %v1075 = vunpack.c.l.b16 %v278
    %v1076 = vunpack.c.h.b16 %v278
    %v1077 = vunpack.c.l.b16 %v279
    %v1078 = vunpack.c.h.b16 %v279
    %v1079 = vunpack.c.l.b16 %v280
    %v1080 = vunpack.c.h.b16 %v280
    %v1081 = vunpack.c.l.b16 %v281
    %v1082 = vunpack.c.h.b16 %v281
    %v1083 = vunpack.c.l.b16 %v282
    %v1084 = vunpack.c.h.b16 %v282
    %v1085 = vunpack.c.l.b16 %v283
    %v1086 = vunpack.c.h.b16 %v283
    %v1087 = vunpack.c.l.b16 %v284
    %v1088 = vunpack.c.h.b16 %v284
    %v1089 = vunpack.c.l.b16 %v285
    %v1090 = vunpack.c.h.b16 %v285
    %v1091 = vunpack.c.l.b16 %v286
    %v1092 = vunpack.c.h.b16 %v286
    %v1093 = vunpack.c.l.b16 %v287
    %v1094 = vunpack.c.h.b16 %v287
    %v1095 = vunpack.c.l.b16 %v288
    %v1096 = vunpack.c.h.b16 %v288
    %v1097 = vunpack.c.l.b16 %v289
    %v1098 = vunpack.c.h.b16 %v289
    %v1099 = vunpack.c.l.b16 %v290
    %v1100 = vunpack.c.h.b16 %v290
    %v1101 = vunpack.c.l.b16 %v291
    %v1102 = vunpack.c.h.b16 %v291
    %v1103 = vunpack.c.l.b16 %v292
    %v1104 = vunpack.c.h.b16 %v292
    %v1105 = vunpack.c.l.b16 %v293
    %v1106 = vunpack.c.h.b16 %v293
    %v1107 = vunpack.c.l.b16 %v294
    %v1108 = vunpack.c.h.b16 %v294
    %v1109 = vunpack.c.l.b16 %v295
    %v1110 = vunpack.c.h.b16 %v295
    %v1111 = vunpack.c.l.b16 %v296
    %v1112 = vunpack.c.h.b16 %v296
    %v1113 = vunpack.c.l.b16 %v297
    %v1114 = vunpack.c.h.b16 %v297
    %v1115 = vunpack.c.l.b16 %v298
    %v1116 = vunpack.c.h.b16 %v298
    %v1117 = vunpack.c.l.b16 %v299
    %v1118 = vunpack.c.h.b16 %v299
    %v1119 = vunpack.c.l.b16 %v300
    %v1120 = vunpack.c.h.b16 %v300
    %v1121 = vunpack.c.l.b16 %v301
    %v1122 = vunpack.c.h.b16 %v301
    %v1123 = vunpack.c.l.b16 %v302
    %v1124 = vunpack.c.h.b16 %v302
    %v1125 = vunpack.c.l.b16 %v303
    %v1126 = vunpack.c.h.b16 %v303
    %v1127 = vunpack.c.l.b16 %v304
    %v1128 = vunpack.c.h.b16 %v304
    %v1129 = vunpack.c.l.b16 %v305
    %v1130 = vunpack.c.h.b16 %v305
    %v1131 = vunpack.c.l.b16 %v306
    %v1132 = vunpack.c.h.b16 %v306
    %v1133 = vunpack.c.l.b16 %v307
    %v1134 = vunpack.c.h.b16 %v307
    %v1135 = vunpack.c.l.b16 %v308
    %v1136 = vunpack.c.h.b16 %v308
    %v1137 = vunpack.c.l.b16 %v309
    %v1138 = vunpack.c.h.b16 %v309
    %v1139 = vunpack.c.l.b16 %v310
    %v1140 = vunpack.c.h.b16 %v310
    %v1141 = vunpack.c.l.b16 %v311
    %v1142 = vunpack.c.h.b16 %v311
    %v1143 = vunpack.c.l.b16 %v312
    %v1144 = vunpack.c.h.b16 %v312
    %v1145 = vunpack.c.l.b16 %v313
    %v1146 = vunpack.c.h.b16 %v313
    %v1147 = vunpack.c.l.b16 %v314
    %v1148 = vunpack.c.h.b16 %v314
    %v1149 = vunpack.c.l.b16 %v315
    %v1150 = vunpack.c.h.b16 %v315
    %v1151 = vunpack.c.l.b16 %v316
    %v1152 = vunpack.c.h.b16 %v316
    %v1153 = vunpack.c.l.b16 %v317
    %v1154 = vunpack.c.h.b16 %v317
    %v1155 = vunpack.c.l.b16 %v318
    %v1156 = vunpack.c.h.b16 %v318
    %v1157 = vunpack.c.l.b16 %v319
    %v1158 = vunpack.c.h.b16 %v319
    %v1159 = vunpack.c.l.b16 %v320
    %v1160 = vunpack.c.h.b16 %v320
    %v1161 = vunpack.c.l.b16 %v321
    %v1162 = vunpack.c.h.b16 %v321
    %v1163 = vunpack.c.l.b16 %v322
    %v1164 = vunpack.c.h.b16 %v322
    %v1165 = vunpack.c.l.b16 %v323
    %v1166 = vunpack.c.h.b16 %v323
    %v1167 = vunpack.c.l.b16 %v324
    %v1168 = vunpack.c.h.b16 %v324
    %v1169 = vunpack.c.l.b16 %v325
    %v1170 = vunpack.c.h.b16 %v325
    %v1171 = vunpack.c.l.b16 %v326
    %v1172 = vunpack.c.h.b16 %v326
    %v1173 = vunpack.c.l.b16 %v327
    %v1174 = vunpack.c.h.b16 %v327
    %v1175 = vunpack.c.l.b16 %v328
    %v1176 = vunpack.c.h.b16 %v328
    %v1177 = vunpack.c.l.b16 %v329
    %v1178 = vunpack.c.h.b16 %v329
    %v1179 = vunpack.c.l.b16 %v330
    %v1180 = vunpack.c.h.b16 %v330
    %v1181 = vunpack.c.l.b16 %v331
    %v1182 = vunpack.c.h.b16 %v331
    %v1183 = vunpack.c.l.b16 %v332
    %v1184 = vunpack.c.h.b16 %v332
    %v1185 = vunpack.c.l.b16 %v333
    %v1186 = vunpack.c.h.b16 %v333
    %v1187 = vunpack.c.l.b16 %v334
    %v1188 = vunpack.c.h.b16 %v334
    %v1189 = vunpack.c.l.b16 %v335
    %v1190 = vunpack.c.h.b16 %v335
    %v1191 = vunpack.c.l.b16 %v336
    %v1192 = vunpack.c.h.b16 %v336
    %v1193 = vunpack.c.l.b16 %v337
    %v1194 = vunpack.c.h.b16 %v337
    %v1195 = vunpack.c.l.b16 %v338
    %v1196 = vunpack.c.h.b16 %v338
    %v1197 = vunpack.c.l.b16 %v339
    %v1198 = vunpack.c.h.b16 %v339
    %v1199 = vunpack.c.l.b16 %v340
    %v1200 = vunpack.c.h.b16 %v340
    %v1201 = vunpack.c.l.b16 %v341
    %v1202 = vunpack.c.h.b16 %v341
    %v1203 = vunpack.c.l.b16 %v342
    %v1204 = vunpack.c.h.b16 %v342
    %v1205 = vunpack.c.l.b16 %v343
    %v1206 = vunpack.c.h.b16 %v343
    %v1207 = vunpack.c.l.b16 %v344
    %v1208 = vunpack.c.h.b16 %v344
    %v1209 = vunpack.c.l.b16 %v345
    %v1210 = vunpack.c.h.b16 %v345
    %v1211 = vunpack.c.l.b16 %v346
    %v1212 = vunpack.c.h.b16 %v346
    %v1213 = vunpack.c.l.b16 %v347
    %v1214 = vunpack.c.h.b16 %v347
    %v1215 = vunpack.c.l.b16 %v348
    %v1216 = vunpack.c.h.b16 %v348
    %v1217 = vunpack.c.l.b16 %v349
    %v1218 = vunpack.c.h.b16 %v349
    %v1219 = vunpack.c.l.b16 %v350
    %v1220 = vunpack.c.h.b16 %v350
    %v1221 = vunpack.c.l.b16 %v351
    %v1222 = vunpack.c.h.b16 %v351
    %v1223 = vunpack.c.l.b16 %v352
    %v1224 = vunpack.c.h.b16 %v352
    %v1225 = vunpack.c.l.b16 %v353
    %v1226 = vunpack.c.h.b16 %v353
    %v1227 = vunpack.c.l.b16 %v354
    %v1228 = vunpack.c.h.b16 %v354
    %v1229 = vunpack.c.l.b16 %v355
    %v1230 = vunpack.c.h.b16 %v355
    %v1231 = vunpack.c.l.b16 %v356
    %v1232 = vunpack.c.h.b16 %v356
    %v1233 = vunpack.c.l.b16 %v357
    %v1234 = vunpack.c.h.b16 %v357
    %v1235 = vunpack.c.l.b16 %v358
    %v1236 = vunpack.c.h.b16 %v358
    %v1237 = vunpack.c.l.b16 %v359
    %v1238 = vunpack.c.h.b16 %v359
    %v1239 = vunpack.c.l.b16 %v360
    %v1240 = vunpack.c.h.b16 %v360
    %v1241 = vunpack.c.l.b16 %v361
    %v1242 = vunpack.c.h.b16 %v361
    %v1243 = vunpack.c.l.b16 %v362
    %v1244 = vunpack.c.h.b16 %v362
    %v1245 = vunpack.c.l.b16 %v363
    %v1246 = vunpack.c.h.b16 %v363
    %v1247 = vunpack.c.l.b16 %v364
    %v1248 = vunpack.c.h.b16 %v364
    %v1249 = vunpack.c.l.b16 %v365
    %v1250 = vunpack.c.h.b16 %v365
    %v1251 = vunpack.c.l.b16 %v366
    %v1252 = vunpack.c.h.b16 %v366
    %v1253 = vunpack.c.l.b16 %v367
    %v1254 = vunpack.c.h.b16 %v367
    %v1255 = vunpack.c.l.b16 %v368
    %v1256 = vunpack.c.h.b16 %v368
    %v1257 = vunpack.c.l.b16 %v369
    %v1258 = vunpack.c.h.b16 %v369
    %v1259 = vunpack.c.l.b16 %v370
    %v1260 = vunpack.c.h.b16 %v370
    %v1261 = vunpack.c.l.b16 %v371
    %v1262 = vunpack.c.h.b16 %v371
    %v1263 = vunpack.c.l.b16 %v372
    %v1264 = vunpack.c.h.b16 %v372
    %v1265 = vunpack.c.l.b16 %v373
    %v1266 = vunpack.c.h.b16 %v373
    %v1267 = vunpack.c.l.b16 %v374
    %v1268 = vunpack.c.h.b16 %v374
    %v1269 = vunpack.c.l.b16 %v375
    %v1270 = vunpack.c.h.b16 %v375
    %v1271 = vunpack.c.l.b16 %v376
    %v1272 = vunpack.c.h.b16 %v376
    %v1273 = vunpack.c.l.b16 %v377
    %v1274 = vunpack.c.h.b16 %v377
    %v1275 = vunpack.c.l.b16 %v378
    %v1276 = vunpack.c.h.b16 %v378
    %v1277 = vunpack.c.l.b16 %v379
    %v1278 = vunpack.c.h.b16 %v379
    %v1279 = vunpack.c.l.b16 %v380
    %v1280 = vunpack.c.h.b16 %v380
    %v1281 = vunpack.c.l.b16 %v381
    %v1282 = vunpack.c.h.b16 %v381
    %v1283 = vunpack.c.l.b16 %v382
    %v1284 = vunpack.c.h.b16 %v382
    %v1285 = vunpack.c.l.b16 %v383
    %v1286 = vunpack.c.h.b16 %v383
    %v1287 = vunpack.c.l.b16 %v384
    %v1288 = vunpack.c.h.b16 %v384
    %v1289 = vunpack.c.l.b16 %v385
    %v1290 = vunpack.c.h.b16 %v385
    %v1291 = vunpack.c.l.b16 %v386
    %v1292 = vunpack.c.h.b16 %v386
    %v1293 = vunpack.c.l.b16 %v387
    %v1294 = vunpack.c.h.b16 %v387
    %v1295 = vunpack.c.l.b16 %v388
    %v1296 = vunpack.c.h.b16 %v388
    %v1297 = vpack.c.b16 %v727, %v721
    %v1298 = vpack.c.b16 %v728, %v722
    %v1299 = vpack.c.b16 %v729, %v723
    %v1300 = vpack.c.b16 %v730, %v724
    %v1301 = vpack.c.b16 %v731, %v725
    %v1302 = vpack.c.b16 %v732, %v726
    %v1303 = vpack.c.b16 %v739, %v733
    %v1304 = vpack.c.b16 %v740, %v734
    %v1305 = vpack.c.b16 %v741, %v735
    %v1306 = vpack.c.b16 %v742, %v736
    %v1307 = vpack.c.b16 %v743, %v737
    %v1308 = vpack.c.b16 %v744, %v738
    %v1309 = vpack.c.b16 %v751, %v745
    %v1310 = vpack.c.b16 %v752, %v746
    %v1311 = vpack.c.b16 %v753, %v747
    %v1312 = vpack.c.b16 %v754, %v748
    %v1313 = vpack.c.b16 %v755, %v749
    %v1314 = vpack.c.b16 %v756, %v750
    %v1315 = vpack.c.b16 %v763, %v757
    %v1316 = vpack.c.b16 %v764, %v758
    %v1317 = vpack.c.b16 %v765, %v759
    %v1318 = vpack.c.b16 %v766, %v760
    %v1319 = vpack.c.b16 %v767, %v761
    %v1320 = vpack.c.b16 %v768, %v762
    %v1321 = vpack.c.b16 %v775, %v769
    %v1322 = vpack.c.b16 %v776, %v770
    %v1323 = vpack.c.b16 %v777, %v771
    %v1324 = vpack.c.b16 %v778, %v772
    %v1325 = vpack.c.b16 %v779, %v773
    %v1326 = vpack.c.b16 %v780, %v774
    %v1327 = vpack.c.b16 %v787, %v781
    %v1328 = vpack.c.b16 %v788, %v782
    %v1329 = vpack.c.b16 %v789, %v783
    %v1330 = vpack.c.b16 %v790, %v784
    %v1331 = vpack.c.b16 %v791, %v785
    %v1332 = vpack.c.b16 %v792, %v786
    %v1333 = vpack.c.b16 %v799, %v793
    %v1334 = vpack.c.b16 %v800, %v794
    %v1335 = vpack.c.b16 %v801, %v795
    %v1336 = vpack.c.b16 %v802, %v796
    %v1337 = vpack.c.b16 %v803, %v797
    %v1338 = vpack.c.b16 %v804, %v798
    %v1339 = vpack.c.b16 %v811, %v805
    %v1340 = vpack.c.b16 %v812, %v806
    %v1341 = vpack.c.b16 %v813, %v807
    %v1342 = vpack.c.b16 %v814, %v808
    %v1343 = vpack.c.b16 %v815, %v809
    %v1344 = vpack.c.b16 %v816, %v810
    %v1345 = vpack.c.b16 %v823, %v817
    %v1346 = vpack.c.b16 %v824, %v818
    %v1347 = vpack.c.b16 %v825, %v819
    %v1348 = vpack.c.b16 %v826, %v820
    %v1349 = vpack.c.b16 %v827, %v821
    %v1350 = vpack.c.b16 %v828, %v822
    %v1351 = vpack.c.b16 %v835, %v829
    %v1352 = vpack.c.b16 %v836, %v830
    %v1353 = vpack.c.b16 %v837, %v831
    %v1354 = vpack.c.b16 %v838, %v832
    %v1355 = vpack.c.b16 %v839, %v833
    %v1356 = vpack.c.b16 %v840, %v834
    %v1357 = vpack.c.b16 %v847, %v841
    %v1358 = vpack.c.b16 %v848, %v842
    %v1359 = vpack.c.b16 %v849, %v843
    %v1360 = vpack.c.b16 %v850, %v844
    %v1361 = vpack.c.b16 %v851, %v845
    %v1362 = vpack.c.b16 %v852, %v846
    %v1363 = vpack.c.b16 %v859, %v853
    %v1364 = vpack.c.b16 %v860, %v854
    %v1365 = vpack.c.b16 %v861, %v855
    %v1366 = vpack.c.b16 %v862, %v856
    %v1367 = vpack.c.b16 %v863, %v857
    %v1368 = vpack.c.b16 %v864, %v858
    %v1369 = vpack.c.b16 %v871, %v865
    %v1370 = vpack.c.b16 %v872, %v866
    %v1371 = vpack.c.b16 %v873, %v867
    %v1372 = vpack.c.b16 %v874, %v868
    %v1373 = vpack.c.b16 %v875, %v869
    %v1374 = vpack.c.b16 %v876, %v870
    %v1375 = vpack.c.b16 %v883, %v877
    %v1376 = vpack.c.b16 %v884, %v878
    %v1377 = vpack.c.b16 %v885, %v879
    %v1378 = vpack.c.b16 %v886, %v880
    %v1379 = vpack.c.b16 %v887, %v881
    %v1380 = vpack.c.b16 %v888, %v882
    %v1381 = vpack.c.b16 %v895, %v889
    %v1382 = vpack.c.b16 %v896, %v890
    %v1383 = vpack.c.b16 %v897, %v891
    %v1384 = vpack.c.b16 %v898, %v892
    %v1385 = vpack.c.b16 %v899, %v893
    %v1386 = vpack.c.b16 %v900, %v894
    %v1387 = vpack.c.b16 %v907, %v901
    %v1388 = vpack.c.b16 %v908, %v902
    %v1389 = vpack.c.b16 %v909, %v903
    %v1390 = vpack.c.b16 %v910, %v904
    %v1391 = vpack.c.b16 %v911, %v905
    %v1392 = vpack.c.b16 %v912, %v906
    %v1393 = vpack.c.b16 %v919, %v913
    %v1394 = vpack.c.b16 %v920, %v914
    %v1395 = vpack.c.b16 %v921, %v915
    %v1396 = vpack.c.b16 %v922, %v916
    %v1397 = vpack.c.b16 %v923, %v917
    %v1398 = vpack.c.b16 %v924, %v918
    %v1399 = vpack.c.b16 %v931, %v925
    %v1400 = vpack.c.b16 %v932, %v926
    %v1401 = vpack.c.b16 %v933, %v927
    %v1402 = vpack.c.b16 %v934, %v928
    %v1403 = vpack.c.b16 %v935, %v929
    %v1404 = vpack.c.b16 %v936, %v930
    %v1405 = vpack.c.b16 %v943, %v937
    %v1406 = vpack.c.b16 %v944, %v938
    %v1407 = vpack.c.b16 %v945, %v939
    %v1408 = vpack.c.b16 %v946, %v940
    %v1409 = vpack.c.b16 %v947, %v941
    %v1410 = vpack.c.b16 %v948, %v942
    %v1411 = vpack.c.b16 %v955, %v949
    %v1412 = vpack.c.b16 %v956, %v950
    %v1413 = vpack.c.b16 %v957, %v951
    %v1414 = vpack.c.b16 %v958, %v952
    %v1415 = vpack.c.b16 %v959, %v953
    %v1416 = vpack.c.b16 %v960, %v954
    %v1417 = vpack.c.b16 %v967, %v961
    %v1418 = vpack.c.b16 %v968, %v962
    %v1419 = vpack.c.b16 %v969, %v963
    %v1420 = vpack.c.b16 %v970, %v964
    %v1421 = vpack.c.b16 %v971, %v965
    %v1422 = vpack.c.b16 %v972, %v966
    %v1423 = vpack.c.b16 %v979, %v973
    %v1424 = vpack.c.b16 %v980, %v974
    %v1425 = vpack.c.b16 %v981, %v975
    %v1426 = vpack.c.b16 %v982, %v976
    %v1427 = vpack.c.b16 %v983, %v977
    %v1428 = vpack.c.b16 %v984, %v978
    %v1429 = vpack.c.b16 %v991, %v985
    %v1430 = vpack.c.b16 %v992, %v986
    %v1431 = vpack.c.b16 %v993, %v987
    %v1432 = vpack.c.b16 %v994, %v988
    %v1433 = vpack.c.b16 %v995, %v989
    %v1434 = vpack.c.b16 %v996, %v990
    %v1435 = vpack.c.b16 %v1003, %v997
    %v1436 = vpack.c.b16 %v1004, %v998
    %v1437 = vpack.c.b16 %v1005, %v999
    %v1438 = vpack.c.b16 %v1006, %v1000
    %v1439 = vpack.c.b16 %v1007, %v1001
    %v1440 = vpack.c.b16 %v1008, %v1002
    %v1441 = vpack.c.b16 %v1015, %v1009
    %v1442 = vpack.c.b16 %v1016, %v1010
    %v1443 = vpack.c.b16 %v1017, %v1011
    %v1444 = vpack.c.b16 %v1018, %v1012
    %v1445 = vpack.c.b16 %v1019, %v1013
    %v1446 = vpack.c.b16 %v1020, %v1014
    %v1447 = vpack.c.b16 %v1027, %v1021
    %v1448 = vpack.c.b16 %v1028, %v1022
    %v1449 = vpack.c.b16 %v1029, %v1023
    %v1450 = vpack.c.b16 %v1030, %v1024
    %v1451 = vpack.c.b16 %v1031, %v1025
    %v1452 = vpack.c.b16 %v1032, %v1026
    %v1453 = vpack.c.b16 %v1039, %v1033
    %v1454 = vpack.c.b16 %v1040, %v1034
    %v1455 = vpack.c.b16 %v1041, %v1035
    %v1456 = vpack.c.b16 %v1042, %v1036
    %v1457 = vpack.c.b16 %v1043, %v1037
    %v1458 = vpack.c.b16 %v1044, %v1038
    %v1459 = vpack.c.b16 %v1051, %v1045
    %v1460 = vpack.c.b16 %v1052, %v1046
    %v1461 = vpack.c.b16 %v1053, %v1047
    %v1462 = vpack.c.b16 %v1054, %v1048
    %v1463 = vpack.c.b16 %v1055, %v1049
    %v1464 = vpack.c.b16 %v1056, %v1050
    %v1465 = vpack.c.b16 %v1063, %v1057
    %v1466 = vpack.c.b16 %v1064, %v1058
    %v1467 = vpack.c.b16 %v1065, %v1059
    %v1468 = vpack.c.b16 %v1066, %v1060
    %v1469 = vpack.c.b16 %v1067, %v1061
    %v1470 = vpack.c.b16 %v1068, %v1062
    %v1471 = vpack.c.b16 %v1075, %v1069
    %v1472 = vpack.c.b16 %v1076, %v1070
    %v1473 = vpack.c.b16 %v1077, %v1071
    %v1474 = vpack.c.b16 %v1078, %v1072
    %v1475 = vpack.c.b16 %v1079, %v1073
    %v1476 = vpack.c.b16 %v1080, %v1074
    %v1477 = vpack.c.b16 %v1087, %v1081
    %v1478 = vpack.c.b16 %v1088, %v1082
    %v1479 = vpack.c.b16 %v1089, %v1083
    %v1480 = vpack.c.b16 %v1090, %v1084
    %v1481 = vpack.c.b16 %v1091, %v1085
    %v1482 = vpack.c.b16 %v1092, %v1086
    %v1483 = vpack.c.b16 %v1099, %v1093
    %v1484 = vpack.c.b16 %v1100, %v1094
    %v1485 = vpack.c.b16 %v1101, %v1095
    %v1486 = vpack.c.b16 %v1102, %v1096
    %v1487 = vpack.c.b16 %v1103, %v1097
    %v1488 = vpack.c.b16 %v1104, %v1098
    %v1489 = vpack.c.b16 %v1111, %v1105
    %v1490 = vpack.c.b16 %v1112, %v1106
    %v1491 = vpack.c.b16 %v1113, %v1107
    %v1492 = vpack.c.b16 %v1114, %v1108
    %v1493 = vpack.c.b16 %v1115, %v1109
    %v1494 = vpack.c.b16 %v1116, %v1110
    %v1495 = vpack.c.b16 %v1123, %v1117
    %v1496 = vpack.c.b16 %v1124, %v1118
    %v1497 = vpack.c.b16 %v1125, %v1119
    %v1498 = vpack.c.b16 %v1126, %v1120
    %v1499 = vpack.c.b16 %v1127, %v1121
    %v1500 = vpack.c.b16 %v1128, %v1122
    %v1501 = vpack.c.b16 %v1135, %v1129
    %v1502 = vpack.c.b16 %v1136, %v1130
    %v1503 = vpack.c.b16 %v1137, %v1131
    %v1504 = vpack.c.b16 %v1138, %v1132
    %v1505 = vpack.c.b16 %v1139, %v1133
    %v1506 = vpack.c.b16 %v1140, %v1134
    %v1507 = vpack.c.b16 %v1147, %v1141
    %v1508 = vpack.c.b16 %v1148, %v1142
    %v1509 = vpack.c.b16 %v1149, %v1143
    %v1510 = vpack.c.b16 %v1150, %v1144
    %v1511 = vpack.c.b16 %v1151, %v1145
    %v1512 = vpack.c.b16 %v1152, %v1146
    %v1513 = vpack.c.b16 %v1159, %v1153
    %v1514 = vpack.c.b16 %v1160, %v1154
    %v1515 = vpack.c.b16 %v1161, %v1155
    %v1516 = vpack.c.b16 %v1162, %v1156
    %v1517 = vpack.c.b16 %v1163, %v1157
    %v1518 = vpack.c.b16 %v1164, %v1158
    %v1519 = vpack.c.b16 %v1171, %v1165
    %v1520 = vpack.c.b16 %v1172, %v1166
    %v1521 = vpack.c.b16 %v1173, %v1167
    %v1522 = vpack.c.b16 %v1174, %v1168
    %v1523 = vpack.c.b16 %v1175, %v1169
    %v1524 = vpack.c.b16 %v1176, %v1170
    %v1525 = vpack.c.b16 %v1183, %v1177
    %v1526 = vpack.c.b16 %v1184, %v1178
    %v1527 = vpack.c.b16 %v1185, %v1179
    %v1528 = vpack.c.b16 %v1186, %v1180
    %v1529 = vpack.c.b16 %v1187, %v1181
    %v1530 = vpack.c.b16 %v1188, %v1182
    %v1531 = vpack.c.b16 %v1195, %v1189
    %v1532 = vpack.c.b16 %v1196, %v1190
    %v1533 = vpack.c.b16 %v1197, %v1191
    %v1534 = vpack.c.b16 %v1198, %v1192
    %v1535 = vpack.c.b16 %v1199, %v1193
    %v1536 = vpack.c.b16 %v1200, %v1194
    %v1537 = vpack.c.b16 %v1207, %v1201
    %v1538 = vpack.c.b16 %v1208, %v1202
    %v1539 = vpack.c.b16 %v1209, %v1203
    %v1540 = vpack.c.b16 %v1210, %v1204
    %v1541 = vpack.c.b16 %v1211, %v1205
    %v1542 = vpack.c.b16 %v1212, %v1206
    %v1543 = vpack.c.b16 %v1219, %v1213
    %v1544 = vpack.c.b16 %v1220, %v1214
    %v1545 = vpack.c.b16 %v1221, %v1215
    %v1546 = vpack.c.b16 %v1222, %v1216
    %v1547 = vpack.c.b16 %v1223, %v1217
    %v1548 = vpack.c.b16 %v1224, %v1218
    %v1549 = vpack.c.b16 %v1231, %v1225
    %v1550 = vpack.c.b16 %v1232, %v1226
    %v1551 = vpack.c.b16 %v1233, %v1227
    %v1552 = vpack.c.b16 %v1234, %v1228
    %v1553 = vpack.c.b16 %v1235, %v1229
    %v1554 = vpack.c.b16 %v1236, %v1230
    %v1555 = vpack.c.b16 %v1243, %v1237
    %v1556 = vpack.c.b16 %v1244, %v1238
    %v1557 = vpack.c.b16 %v1245, %v1239
    %v1558 = vpack.c.b16 %v1246, %v1240
    %v1559 = vpack.c.b16 %v1247, %v1241
    %v1560 = vpack.c.b16 %v1248, %v1242
    %v1561 = vpack.c.b16 %v1255, %v1249
    %v1562 = vpack.c.b16 %v1256, %v1250
    %v1563 = vpack.c.b16 %v1257, %v1251
    %v1564 = vpack.c.b16 %v1258, %v1252
    %v1565 = vpack.c.b16 %v1259, %v1253
    %v1566 = vpack.c.b16 %v1260, %v1254
    %v1567 = vpack.c.b16 %v1267, %v1261
    %v1568 = vpack.c.b16 %v1268, %v1262
    %v1569 = vpack.c.b16 %v1269, %v1263
    %v1570 = vpack.c.b16 %v1270, %v1264
    %v1571 = vpack.c.b16 %v1271, %v1265
    %v1572 = vpack.c.b16 %v1272, %v1266
    %v1573 = vpack.c.b16 %v1279, %v1273
    %v1574 = vpack.c.b16 %v1280, %v1274
    %v1575 = vpack.c.b16 %v1281, %v1275
    %v1576 = vpack.c.b16 %v1282, %v1276
    %v1577 = vpack.c.b16 %v1283, %v1277
    %v1578 = vpack.c.b16 %v1284, %v1278
    %v1579 = vpack.c.b16 %v1291, %v1285
    %v1580 = vpack.c.b16 %v1292, %v1286
    %v1581 = vpack.c.b16 %v1293, %v1287
    %v1582 = vpack.c.b16 %v1294, %v1288
    %v1583 = vpack.c.b16 %v1295, %v1289
    %v1584 = vpack.c.b16 %v1296, %v1290
    %1873 = vmatpush.bf16.msra.mxu0 %v1339
    %1874 = vmatpush.bf16.msra.mxu0 %v1333
    %1875 = vmatpush.bf16.msra.mxu0 %v1327
    %1876 = vmatpush.bf16.msra.mxu0 %v1321
    %1877 = vmatpush.bf16.msra.mxu0 %v1315
    %1878 = vmatpush.bf16.msra.mxu0 %v1309
    %1879 = vmatpush.bf16.msra.mxu0 %v1303
    %1880 = vmatpush.bf16.msra.mxu0 %v1297
    %1881 = vmatmul.bf16.gmra.mxu0 %v421
    %v1882 = vpop.f32.mrf.mxu0
    %v1883 = vadd.f32 %v391, %v1882
    %v1884 = vpop.f32.mrf.mxu0
    %v1885 = vadd.f32 %v391, %v1884
    %1886 = vdwg.mxu0
    %1887 = vmatpush.bf16.msra.mxu0 %v1387
    %1888 = vmatpush.bf16.msra.mxu0 %v1381
    %1889 = vmatpush.bf16.msra.mxu0 %v1375
    %1890 = vmatpush.bf16.msra.mxu0 %v1369
    %1891 = vmatpush.bf16.msra.mxu0 %v1363
    %1892 = vmatpush.bf16.msra.mxu0 %v1357
    %1893 = vmatpush.bf16.msra.mxu0 %v1351
    %1894 = vmatpush.bf16.msra.mxu0 %v1345
    %1895 = vmatmul.bf16.gmra.mxu0 %v422
    %v1896 = vpop.f32.mrf.mxu0
    %v1897 = vadd.f32 %v1883, %v1896
    %v1898 = vpop.f32.mrf.mxu0
    %v1899 = vadd.f32 %v1885, %v1898
    %1900 = vdwg.mxu0
    %1901 = vmatpush.bf16.msra.mxu0 %v1435
    %1902 = vmatpush.bf16.msra.mxu0 %v1429
    %1903 = vmatpush.bf16.msra.mxu0 %v1423
    %1904 = vmatpush.bf16.msra.mxu0 %v1417
    %1905 = vmatpush.bf16.msra.mxu0 %v1411
    %1906 = vmatpush.bf16.msra.mxu0 %v1405
    %1907 = vmatpush.bf16.msra.mxu0 %v1399
    %1908 = vmatpush.bf16.msra.mxu0 %v1393
    %1909 = vmatmul.bf16.gmra.mxu0 %v423
    %v1910 = vpop.f32.mrf.mxu0
    %v1911 = vadd.f32 %v1897, %v1910
    %v1912 = vpop.f32.mrf.mxu0
    %v1913 = vadd.f32 %v1899, %v1912
    %1914 = vdwg.mxu0
    %1915 = vmatpush.bf16.msra.mxu0 %v1483
    %1916 = vmatpush.bf16.msra.mxu0 %v1477
    %1917 = vmatpush.bf16.msra.mxu0 %v1471
    %1918 = vmatpush.bf16.msra.mxu0 %v1465
    %1919 = vmatpush.bf16.msra.mxu0 %v1459
    %1920 = vmatpush.bf16.msra.mxu0 %v1453
    %1921 = vmatpush.bf16.msra.mxu0 %v1447
    %1922 = vmatpush.bf16.msra.mxu0 %v1441
    %1923 = vmatmul.bf16.gmra.mxu0 %v424
    %v1924 = vpop.f32.mrf.mxu0
    %v1925 = vadd.f32 %v1911, %v1924
    %v1926 = vpop.f32.mrf.mxu0
    %v1927 = vadd.f32 %v1913, %v1926
    %1928 = vdwg.mxu0
    %1929 = vmatpush.bf16.msra.mxu0 %v1531
    %1930 = vmatpush.bf16.msra.mxu0 %v1525
    %1931 = vmatpush.bf16.msra.mxu0 %v1519
    %1932 = vmatpush.bf16.msra.mxu0 %v1513
    %1933 = vmatpush.bf16.msra.mxu0 %v1507
    %1934 = vmatpush.bf16.msra.mxu0 %v1501
    %1935 = vmatpush.bf16.msra.mxu0 %v1495
    %1936 = vmatpush.bf16.msra.mxu0 %v1489
    %1937 = vmatmul.bf16.gmra.mxu0 %v425
    %v1938 = vpop.f32.mrf.mxu0
    %v1939 = vadd.f32 %v1925, %v1938
    %v1940 = vpop.f32.mrf.mxu0
    %v1941 = vadd.f32 %v1927, %v1940
    %1942 = vdwg.mxu0
    %1943 = vmatpush.bf16.msra.mxu0 %v1579
    %1944 = vmatpush.bf16.msra.mxu0 %v1573
    %1945 = vmatpush.bf16.msra.mxu0 %v1567
    %1946 = vmatpush.bf16.msra.mxu0 %v1561
    %1947 = vmatpush.bf16.msra.mxu0 %v1555
    %1948 = vmatpush.bf16.msra.mxu0 %v1549
    %1949 = vmatpush.bf16.msra.mxu0 %v1543
    %1950 = vmatpush.bf16.msra.mxu0 %v1537
    %1951 = vmatmul.bf16.gmra.mxu0 %v426
    %v1952 = vpop.f32.mrf.mxu0
    %v1953 = vadd.f32 %v1939, %v1952
    %v1954 = vpop.f32.mrf.mxu0
    %v1955 = vadd.f32 %v1941, %v1954
    %1956 = vdwg.mxu0
    %1957 = vmatpush.bf16.msra.mxu0 %v1340
    %1958 = vmatpush.bf16.msra.mxu0 %v1334
    %1959 = vmatpush.bf16.msra.mxu0 %v1328
    %1960 = vmatpush.bf16.msra.mxu0 %v1322
    %1961 = vmatpush.bf16.msra.mxu0 %v1316
    %1962 = vmatpush.bf16.msra.mxu0 %v1310
    %1963 = vmatpush.bf16.msra.mxu0 %v1304
    %1964 = vmatpush.bf16.msra.mxu0 %v1298
    %1965 = vmatmul.bf16.gmra.mxu0 %v421
    %v1966 = vpop.f32.mrf.mxu0
    %v1967 = vadd.f32 %v392, %v1966
    %v1968 = vpop.f32.mrf.mxu0
    %v1969 = vadd.f32 %v392, %v1968
    %1970 = vdwg.mxu0
    %1971 = vmatpush.bf16.msra.mxu0 %v1388
    %1972 = vmatpush.bf16.msra.mxu0 %v1382
    %1973 = vmatpush.bf16.msra.mxu0 %v1376
    %1974 = vmatpush.bf16.msra.mxu0 %v1370
    %1975 = vmatpush.bf16.msra.mxu0 %v1364
    %1976 = vmatpush.bf16.msra.mxu0 %v1358
    %1977 = vmatpush.bf16.msra.mxu0 %v1352
    %1978 = vmatpush.bf16.msra.mxu0 %v1346
    %1979 = vmatmul.bf16.gmra.mxu0 %v422
    %v1980 = vpop.f32.mrf.mxu0
    %v1981 = vadd.f32 %v1967, %v1980
    %v1982 = vpop.f32.mrf.mxu0
    %v1983 = vadd.f32 %v1969, %v1982
    %1984 = vdwg.mxu0
    %1985 = vmatpush.bf16.msra.mxu0 %v1436
    %1986 = vmatpush.bf16.msra.mxu0 %v1430
    %1987 = vmatpush.bf16.msra.mxu0 %v1424
    %1988 = vmatpush.bf16.msra.mxu0 %v1418
    %1989 = vmatpush.bf16.msra.mxu0 %v1412
    %1990 = vmatpush.bf16.msra.mxu0 %v1406
    %1991 = vmatpush.bf16.msra.mxu0 %v1400
    %1992 = vmatpush.bf16.msra.mxu0 %v1394
    %1993 = vmatmul.bf16.gmra.mxu0 %v423
    %v1994 = vpop.f32.mrf.mxu0
    %v1995 = vadd.f32 %v1981, %v1994
    %v1996 = vpop.f32.mrf.mxu0
    %v1997 = vadd.f32 %v1983, %v1996
    %1998 = vdwg.mxu0
    %1999 = vmatpush.bf16.msra.mxu0 %v1484
    %2000 = vmatpush.bf16.msra.mxu0 %v1478
    %2001 = vmatpush.bf16.msra.mxu0 %v1472
    %2002 = vmatpush.bf16.msra.mxu0 %v1466
    %2003 = vmatpush.bf16.msra.mxu0 %v1460
    %2004 = vmatpush.bf16.msra.mxu0 %v1454
    %2005 = vmatpush.bf16.msra.mxu0 %v1448
    %2006 = vmatpush.bf16.msra.mxu0 %v1442
    %2007 = vmatmul.bf16.gmra.mxu0 %v424
    %v2008 = vpop.f32.mrf.mxu0
    %v2009 = vadd.f32 %v1995, %v2008
    %v2010 = vpop.f32.mrf.mxu0
    %v2011 = vadd.f32 %v1997, %v2010
    %2012 = vdwg.mxu0
    %2013 = vmatpush.bf16.msra.mxu0 %v1532
    %2014 = vmatpush.bf16.msra.mxu0 %v1526
    %2015 = vmatpush.bf16.msra.mxu0 %v1520
    %2016 = vmatpush.bf16.msra.mxu0 %v1514
    %2017 = vmatpush.bf16.msra.mxu0 %v1508
    %2018 = vmatpush.bf16.msra.mxu0 %v1502
    %2019 = vmatpush.bf16.msra.mxu0 %v1496
    %2020 = vmatpush.bf16.msra.mxu0 %v1490
    %2021 = vmatmul.bf16.gmra.mxu0 %v425
    %v2022 = vpop.f32.mrf.mxu0
    %v2023 = vadd.f32 %v2009, %v2022
    %v2024 = vpop.f32.mrf.mxu0
    %v2025 = vadd.f32 %v2011, %v2024
    %2026 = vdwg.mxu0
    %2027 = vmatpush.bf16.msra.mxu0 %v1580
    %2028 = vmatpush.bf16.msra.mxu0 %v1574
    %2029 = vmatpush.bf16.msra.mxu0 %v1568
    %2030 = vmatpush.bf16.msra.mxu0 %v1562
    %2031 = vmatpush.bf16.msra.mxu0 %v1556
    %2032 = vmatpush.bf16.msra.mxu0 %v1550
    %2033 = vmatpush.bf16.msra.mxu0 %v1544
    %2034 = vmatpush.bf16.msra.mxu0 %v1538
    %2035 = vmatmul.bf16.gmra.mxu0 %v426
    %v2036 = vpop.f32.mrf.mxu0
    %v2037 = vadd.f32 %v2023, %v2036
    %v2038 = vpop.f32.mrf.mxu0
    %v2039 = vadd.f32 %v2025, %v2038
    %2040 = vdwg.mxu0
    %2041 = vmatpush.bf16.msra.mxu0 %v1341
    %2042 = vmatpush.bf16.msra.mxu0 %v1335
    %2043 = vmatpush.bf16.msra.mxu0 %v1329
    %2044 = vmatpush.bf16.msra.mxu0 %v1323
    %2045 = vmatpush.bf16.msra.mxu0 %v1317
    %2046 = vmatpush.bf16.msra.mxu0 %v1311
    %2047 = vmatpush.bf16.msra.mxu0 %v1305
    %2048 = vmatpush.bf16.msra.mxu0 %v1299
    %2049 = vmatmul.bf16.gmra.mxu0 %v421
    %v2050 = vpop.f32.mrf.mxu0
    %v2051 = vadd.f32 %v393, %v2050
    %v2052 = vpop.f32.mrf.mxu0
    %v2053 = vadd.f32 %v393, %v2052
    %2054 = vdwg.mxu0
    %2055 = vmatpush.bf16.msra.mxu0 %v1389
    %2056 = vmatpush.bf16.msra.mxu0 %v1383
    %2057 = vmatpush.bf16.msra.mxu0 %v1377
    %2058 = vmatpush.bf16.msra.mxu0 %v1371
    %2059 = vmatpush.bf16.msra.mxu0 %v1365
    %2060 = vmatpush.bf16.msra.mxu0 %v1359
    %2061 = vmatpush.bf16.msra.mxu0 %v1353
    %2062 = vmatpush.bf16.msra.mxu0 %v1347
    %2063 = vmatmul.bf16.gmra.mxu0 %v422
    %v2064 = vpop.f32.mrf.mxu0
    %v2065 = vadd.f32 %v2051, %v2064
    %v2066 = vpop.f32.mrf.mxu0
    %v2067 = vadd.f32 %v2053, %v2066
    %2068 = vdwg.mxu0
    %2069 = vmatpush.bf16.msra.mxu0 %v1437
    %2070 = vmatpush.bf16.msra.mxu0 %v1431
    %2071 = vmatpush.bf16.msra.mxu0 %v1425
    %2072 = vmatpush.bf16.msra.mxu0 %v1419
    %2073 = vmatpush.bf16.msra.mxu0 %v1413
    %2074 = vmatpush.bf16.msra.mxu0 %v1407
    %2075 = vmatpush.bf16.msra.mxu0 %v1401
    %2076 = vmatpush.bf16.msra.mxu0 %v1395
    %2077 = vmatmul.bf16.gmra.mxu0 %v423
    %v2078 = vpop.f32.mrf.mxu0
    %v2079 = vadd.f32 %v2065, %v2078
    %v2080 = vpop.f32.mrf.mxu0
    %v2081 = vadd.f32 %v2067, %v2080
    %2082 = vdwg.mxu0
    %2083 = vmatpush.bf16.msra.mxu0 %v1485
    %2084 = vmatpush.bf16.msra.mxu0 %v1479
    %2085 = vmatpush.bf16.msra.mxu0 %v1473
    %2086 = vmatpush.bf16.msra.mxu0 %v1467
    %2087 = vmatpush.bf16.msra.mxu0 %v1461
    %2088 = vmatpush.bf16.msra.mxu0 %v1455
    %2089 = vmatpush.bf16.msra.mxu0 %v1449
    %2090 = vmatpush.bf16.msra.mxu0 %v1443
    %2091 = vmatmul.bf16.gmra.mxu0 %v424
    %v2092 = vpop.f32.mrf.mxu0
    %v2093 = vadd.f32 %v2079, %v2092
    %v2094 = vpop.f32.mrf.mxu0
    %v2095 = vadd.f32 %v2081, %v2094
    %2096 = vdwg.mxu0
    %2097 = vmatpush.bf16.msra.mxu0 %v1533
    %2098 = vmatpush.bf16.msra.mxu0 %v1527
    %2099 = vmatpush.bf16.msra.mxu0 %v1521
    %2100 = vmatpush.bf16.msra.mxu0 %v1515
    %2101 = vmatpush.bf16.msra.mxu0 %v1509
    %2102 = vmatpush.bf16.msra.mxu0 %v1503
    %2103 = vmatpush.bf16.msra.mxu0 %v1497
    %2104 = vmatpush.bf16.msra.mxu0 %v1491
    %2105 = vmatmul.bf16.gmra.mxu0 %v425
    %v2106 = vpop.f32.mrf.mxu0
    %v2107 = vadd.f32 %v2093, %v2106
    %v2108 = vpop.f32.mrf.mxu0
    %v2109 = vadd.f32 %v2095, %v2108
    %2110 = vdwg.mxu0
    %2111 = vmatpush.bf16.msra.mxu0 %v1581
    %2112 = vmatpush.bf16.msra.mxu0 %v1575
    %2113 = vmatpush.bf16.msra.mxu0 %v1569
    %2114 = vmatpush.bf16.msra.mxu0 %v1563
    %2115 = vmatpush.bf16.msra.mxu0 %v1557
    %2116 = vmatpush.bf16.msra.mxu0 %v1551
    %2117 = vmatpush.bf16.msra.mxu0 %v1545
    %2118 = vmatpush.bf16.msra.mxu0 %v1539
    %2119 = vmatmul.bf16.gmra.mxu0 %v426
    %v2120 = vpop.f32.mrf.mxu0
    %v2121 = vadd.f32 %v2107, %v2120
    %v2122 = vpop.f32.mrf.mxu0
    %v2123 = vadd.f32 %v2109, %v2122
    %2124 = vdwg.mxu0
    %2125 = vmatpush.bf16.msra.mxu0 %v1342
    %2126 = vmatpush.bf16.msra.mxu0 %v1336
    %2127 = vmatpush.bf16.msra.mxu0 %v1330
    %2128 = vmatpush.bf16.msra.mxu0 %v1324
    %2129 = vmatpush.bf16.msra.mxu0 %v1318
    %2130 = vmatpush.bf16.msra.mxu0 %v1312
    %2131 = vmatpush.bf16.msra.mxu0 %v1306
    %2132 = vmatpush.bf16.msra.mxu0 %v1300
    %2133 = vmatmul.bf16.gmra.mxu0 %v421
    %v2134 = vpop.f32.mrf.mxu0
    %v2135 = vadd.f32 %v394, %v2134
    %v2136 = vpop.f32.mrf.mxu0
    %v2137 = vadd.f32 %v394, %v2136
    %2138 = vdwg.mxu0
    %2139 = vmatpush.bf16.msra.mxu0 %v1390
    %2140 = vmatpush.bf16.msra.mxu0 %v1384
    %2141 = vmatpush.bf16.msra.mxu0 %v1378
    %2142 = vmatpush.bf16.msra.mxu0 %v1372
    %2143 = vmatpush.bf16.msra.mxu0 %v1366
    %2144 = vmatpush.bf16.msra.mxu0 %v1360
    %2145 = vmatpush.bf16.msra.mxu0 %v1354
    %2146 = vmatpush.bf16.msra.mxu0 %v1348
    %2147 = vmatmul.bf16.gmra.mxu0 %v422
    %v2148 = vpop.f32.mrf.mxu0
    %v2149 = vadd.f32 %v2135, %v2148
    %v2150 = vpop.f32.mrf.mxu0
    %v2151 = vadd.f32 %v2137, %v2150
    %2152 = vdwg.mxu0
    %2153 = vmatpush.bf16.msra.mxu0 %v1438
    %2154 = vmatpush.bf16.msra.mxu0 %v1432
    %2155 = vmatpush.bf16.msra.mxu0 %v1426
    %2156 = vmatpush.bf16.msra.mxu0 %v1420
    %2157 = vmatpush.bf16.msra.mxu0 %v1414
    %2158 = vmatpush.bf16.msra.mxu0 %v1408
    %2159 = vmatpush.bf16.msra.mxu0 %v1402
    %2160 = vmatpush.bf16.msra.mxu0 %v1396
    %2161 = vmatmul.bf16.gmra.mxu0 %v423
    %v2162 = vpop.f32.mrf.mxu0
    %v2163 = vadd.f32 %v2149, %v2162
    %v2164 = vpop.f32.mrf.mxu0
    %v2165 = vadd.f32 %v2151, %v2164
    %2166 = vdwg.mxu0
    %2167 = vmatpush.bf16.msra.mxu0 %v1486
    %2168 = vmatpush.bf16.msra.mxu0 %v1480
    %2169 = vmatpush.bf16.msra.mxu0 %v1474
    %2170 = vmatpush.bf16.msra.mxu0 %v1468
    %2171 = vmatpush.bf16.msra.mxu0 %v1462
    %2172 = vmatpush.bf16.msra.mxu0 %v1456
    %2173 = vmatpush.bf16.msra.mxu0 %v1450
    %2174 = vmatpush.bf16.msra.mxu0 %v1444
    %2175 = vmatmul.bf16.gmra.mxu0 %v424
    %v2176 = vpop.f32.mrf.mxu0
    %v2177 = vadd.f32 %v2163, %v2176
    %v2178 = vpop.f32.mrf.mxu0
    %v2179 = vadd.f32 %v2165, %v2178
    %2180 = vdwg.mxu0
    %2181 = vmatpush.bf16.msra.mxu0 %v1534
    %2182 = vmatpush.bf16.msra.mxu0 %v1528
    %2183 = vmatpush.bf16.msra.mxu0 %v1522
    %2184 = vmatpush.bf16.msra.mxu0 %v1516
    %2185 = vmatpush.bf16.msra.mxu0 %v1510
    %2186 = vmatpush.bf16.msra.mxu0 %v1504
    %2187 = vmatpush.bf16.msra.mxu0 %v1498
    %2188 = vmatpush.bf16.msra.mxu0 %v1492
    %2189 = vmatmul.bf16.gmra.mxu0 %v425
    %v2190 = vpop.f32.mrf.mxu0
    %v2191 = vadd.f32 %v2177, %v2190
    %v2192 = vpop.f32.mrf.mxu0
    %v2193 = vadd.f32 %v2179, %v2192
    %2194 = vdwg.mxu0
    %2195 = vmatpush.bf16.msra.mxu0 %v1582
    %2196 = vmatpush.bf16.msra.mxu0 %v1576
    %2197 = vmatpush.bf16.msra.mxu0 %v1570
    %2198 = vmatpush.bf16.msra.mxu0 %v1564
    %2199 = vmatpush.bf16.msra.mxu0 %v1558
    %2200 = vmatpush.bf16.msra.mxu0 %v1552
    %2201 = vmatpush.bf16.msra.mxu0 %v1546
    %2202 = vmatpush.bf16.msra.mxu0 %v1540
    %2203 = vmatmul.bf16.gmra.mxu0 %v426
    %v2204 = vpop.f32.mrf.mxu0
    %v2205 = vadd.f32 %v2191, %v2204
    %v2206 = vpop.f32.mrf.mxu0
    %v2207 = vadd.f32 %v2193, %v2206
    %2208 = vdwg.mxu0
    %2209 = vmatpush.bf16.msra.mxu0 %v1343
    %2210 = vmatpush.bf16.msra.mxu0 %v1337
    %2211 = vmatpush.bf16.msra.mxu0 %v1331
    %2212 = vmatpush.bf16.msra.mxu0 %v1325
    %2213 = vmatpush.bf16.msra.mxu0 %v1319
    %2214 = vmatpush.bf16.msra.mxu0 %v1313
    %2215 = vmatpush.bf16.msra.mxu0 %v1307
    %2216 = vmatpush.bf16.msra.mxu0 %v1301
    %2217 = vmatmul.bf16.gmra.mxu0 %v421
    %v2218 = vpop.f32.mrf.mxu0
    %v2219 = vadd.f32 %v395, %v2218
    %v2220 = vpop.f32.mrf.mxu0
    %v2221 = vadd.f32 %v395, %v2220
    %2222 = vdwg.mxu0
    %2223 = vmatpush.bf16.msra.mxu0 %v1391
    %2224 = vmatpush.bf16.msra.mxu0 %v1385
    %2225 = vmatpush.bf16.msra.mxu0 %v1379
    %2226 = vmatpush.bf16.msra.mxu0 %v1373
    %2227 = vmatpush.bf16.msra.mxu0 %v1367
    %2228 = vmatpush.bf16.msra.mxu0 %v1361
    %2229 = vmatpush.bf16.msra.mxu0 %v1355
    %2230 = vmatpush.bf16.msra.mxu0 %v1349
    %2231 = vmatmul.bf16.gmra.mxu0 %v422
    %v2232 = vpop.f32.mrf.mxu0
    %v2233 = vadd.f32 %v2219, %v2232
    %v2234 = vpop.f32.mrf.mxu0
    %v2235 = vadd.f32 %v2221, %v2234
    %2236 = vdwg.mxu0
    %2237 = vmatpush.bf16.msra.mxu0 %v1439
    %2238 = vmatpush.bf16.msra.mxu0 %v1433
    %2239 = vmatpush.bf16.msra.mxu0 %v1427
    %2240 = vmatpush.bf16.msra.mxu0 %v1421
    %2241 = vmatpush.bf16.msra.mxu0 %v1415
    %2242 = vmatpush.bf16.msra.mxu0 %v1409
    %2243 = vmatpush.bf16.msra.mxu0 %v1403
    %2244 = vmatpush.bf16.msra.mxu0 %v1397
    %2245 = vmatmul.bf16.gmra.mxu0 %v423
    %v2246 = vpop.f32.mrf.mxu0
    %v2247 = vadd.f32 %v2233, %v2246
    %v2248 = vpop.f32.mrf.mxu0
    %v2249 = vadd.f32 %v2235, %v2248
    %2250 = vdwg.mxu0
    %2251 = vmatpush.bf16.msra.mxu0 %v1487
    %2252 = vmatpush.bf16.msra.mxu0 %v1481
    %2253 = vmatpush.bf16.msra.mxu0 %v1475
    %2254 = vmatpush.bf16.msra.mxu0 %v1469
    %2255 = vmatpush.bf16.msra.mxu0 %v1463
    %2256 = vmatpush.bf16.msra.mxu0 %v1457
    %2257 = vmatpush.bf16.msra.mxu0 %v1451
    %2258 = vmatpush.bf16.msra.mxu0 %v1445
    %2259 = vmatmul.bf16.gmra.mxu0 %v424
    %v2260 = vpop.f32.mrf.mxu0
    %v2261 = vadd.f32 %v2247, %v2260
    %v2262 = vpop.f32.mrf.mxu0
    %v2263 = vadd.f32 %v2249, %v2262
    %2264 = vdwg.mxu0
    %2265 = vmatpush.bf16.msra.mxu0 %v1535
    %2266 = vmatpush.bf16.msra.mxu0 %v1529
    %2267 = vmatpush.bf16.msra.mxu0 %v1523
    %2268 = vmatpush.bf16.msra.mxu0 %v1517
    %2269 = vmatpush.bf16.msra.mxu0 %v1511
    %2270 = vmatpush.bf16.msra.mxu0 %v1505
    %2271 = vmatpush.bf16.msra.mxu0 %v1499
    %2272 = vmatpush.bf16.msra.mxu0 %v1493
    %2273 = vmatmul.bf16.gmra.mxu0 %v425
    %v2274 = vpop.f32.mrf.mxu0
    %v2275 = vadd.f32 %v2261, %v2274
    %v2276 = vpop.f32.mrf.mxu0
    %v2277 = vadd.f32 %v2263, %v2276
    %2278 = vdwg.mxu0
    %2279 = vmatpush.bf16.msra.mxu0 %v1583
    %2280 = vmatpush.bf16.msra.mxu0 %v1577
    %2281 = vmatpush.bf16.msra.mxu0 %v1571
    %2282 = vmatpush.bf16.msra.mxu0 %v1565
    %2283 = vmatpush.bf16.msra.mxu0 %v1559
    %2284 = vmatpush.bf16.msra.mxu0 %v1553
    %2285 = vmatpush.bf16.msra.mxu0 %v1547
    %2286 = vmatpush.bf16.msra.mxu0 %v1541
    %2287 = vmatmul.bf16.gmra.mxu0 %v426
    %v2288 = vpop.f32.mrf.mxu0
    %v2289 = vadd.f32 %v2275, %v2288
    %v2290 = vpop.f32.mrf.mxu0
    %v2291 = vadd.f32 %v2277, %v2290
    %2292 = vdwg.mxu0
    %2293 = vmatpush.bf16.msra.mxu0 %v1344
    %2294 = vmatpush.bf16.msra.mxu0 %v1338
    %2295 = vmatpush.bf16.msra.mxu0 %v1332
    %2296 = vmatpush.bf16.msra.mxu0 %v1326
    %2297 = vmatpush.bf16.msra.mxu0 %v1320
    %2298 = vmatpush.bf16.msra.mxu0 %v1314
    %2299 = vmatpush.bf16.msra.mxu0 %v1308
    %2300 = vmatpush.bf16.msra.mxu0 %v1302
    %2301 = vmatmul.bf16.gmra.mxu0 %v421
    %v2302 = vpop.f32.mrf.mxu0
    %v2303 = vadd.f32 %v396, %v2302
    %v2304 = vpop.f32.mrf.mxu0
    %v2305 = vadd.f32 %v396, %v2304
    %2306 = vdwg.mxu0
    %2307 = vmatpush.bf16.msra.mxu0 %v1392
    %2308 = vmatpush.bf16.msra.mxu0 %v1386
    %2309 = vmatpush.bf16.msra.mxu0 %v1380
    %2310 = vmatpush.bf16.msra.mxu0 %v1374
    %2311 = vmatpush.bf16.msra.mxu0 %v1368
    %2312 = vmatpush.bf16.msra.mxu0 %v1362
    %2313 = vmatpush.bf16.msra.mxu0 %v1356
    %2314 = vmatpush.bf16.msra.mxu0 %v1350
    %2315 = vmatmul.bf16.gmra.mxu0 %v422
    %v2316 = vpop.f32.mrf.mxu0
    %v2317 = vadd.f32 %v2303, %v2316
    %v2318 = vpop.f32.mrf.mxu0
    %v2319 = vadd.f32 %v2305, %v2318
    %2320 = vdwg.mxu0
    %2321 = vmatpush.bf16.msra.mxu0 %v1440
    %2322 = vmatpush.bf16.msra.mxu0 %v1434
    %2323 = vmatpush.bf16.msra.mxu0 %v1428
    %2324 = vmatpush.bf16.msra.mxu0 %v1422
    %2325 = vmatpush.bf16.msra.mxu0 %v1416
    %2326 = vmatpush.bf16.msra.mxu0 %v1410
    %2327 = vmatpush.bf16.msra.mxu0 %v1404
    %2328 = vmatpush.bf16.msra.mxu0 %v1398
    %2329 = vmatmul.bf16.gmra.mxu0 %v423
    %v2330 = vpop.f32.mrf.mxu0
    %v2331 = vadd.f32 %v2317, %v2330
    %v2332 = vpop.f32.mrf.mxu0
    %v2333 = vadd.f32 %v2319, %v2332
    %2334 = vdwg.mxu0
    %2335 = vmatpush.bf16.msra.mxu0 %v1488
    %2336 = vmatpush.bf16.msra.mxu0 %v1482
    %2337 = vmatpush.bf16.msra.mxu0 %v1476
    %2338 = vmatpush.bf16.msra.mxu0 %v1470
    %2339 = vmatpush.bf16.msra.mxu0 %v1464
    %2340 = vmatpush.bf16.msra.mxu0 %v1458
    %2341 = vmatpush.bf16.msra.mxu0 %v1452
    %2342 = vmatpush.bf16.msra.mxu0 %v1446
    %2343 = vmatmul.bf16.gmra.mxu0 %v424
    %v2344 = vpop.f32.mrf.mxu0
    %v2345 = vadd.f32 %v2331, %v2344
    %v2346 = vpop.f32.mrf.mxu0
    %v2347 = vadd.f32 %v2333, %v2346
    %2348 = vdwg.mxu0
    %2349 = vmatpush.bf16.msra.mxu0 %v1536
    %2350 = vmatpush.bf16.msra.mxu0 %v1530
    %2351 = vmatpush.bf16.msra.mxu0 %v1524
    %2352 = vmatpush.bf16.msra.mxu0 %v1518
    %2353 = vmatpush.bf16.msra.mxu0 %v1512
    %2354 = vmatpush.bf16.msra.mxu0 %v1506
    %2355 = vmatpush.bf16.msra.mxu0 %v1500
    %2356 = vmatpush.bf16.msra.mxu0 %v1494
    %2357 = vmatmul.bf16.gmra.mxu0 %v425
    %v2358 = vpop.f32.mrf.mxu0
    %v2359 = vadd.f32 %v2345, %v2358
    %v2360 = vpop.f32.mrf.mxu0
    %v2361 = vadd.f32 %v2347, %v2360
    %2362 = vdwg.mxu0
    %2363 = vmatpush.bf16.msra.mxu0 %v1584
    %2364 = vmatpush.bf16.msra.mxu0 %v1578
    %2365 = vmatpush.bf16.msra.mxu0 %v1572
    %2366 = vmatpush.bf16.msra.mxu0 %v1566
    %2367 = vmatpush.bf16.msra.mxu0 %v1560
    %2368 = vmatpush.bf16.msra.mxu0 %v1554
    %2369 = vmatpush.bf16.msra.mxu0 %v1548
    %2370 = vmatpush.bf16.msra.mxu0 %v1542
    %2371 = vmatmul.bf16.gmra.mxu0 %v426
    %v2372 = vpop.f32.mrf.mxu0
    %v2373 = vadd.f32 %v2359, %v2372
    %v2374 = vpop.f32.mrf.mxu0
    %v2375 = vadd.f32 %v2361, %v2374
    %2376 = vdwg.mxu0
    %v2377 = vmax.f32 %v1953, 0.0
    %v2378 = vmax.f32 %v2037, 0.0
    %v2379 = vmax.f32 %v2121, 0.0
    %v2380 = vmax.f32 %v2205, 0.0
    %v2381 = vmax.f32 %v2289, 0.0
    %v2382 = vmax.f32 %v2373, 0.0
    %v2383 = vmax.f32 %v1955, 0.0
    %v2384 = vmax.f32 %v2039, 0.0
    %v2385 = vmax.f32 %v2123, 0.0
    %v2386 = vmax.f32 %v2207, 0.0
    %v2387 = vmax.f32 %v2291, 0.0
    %v2388 = vmax.f32 %v2375, 0.0
    %v2389 = vpack.c.bf16 %v2383, %v2377
    %v2390 = vpack.c.bf16 %v2384, %v2378
    %v2391 = vpack.c.bf16 %v2385, %v2379
    %v2392 = vpack.c.bf16 %v2386, %v2380
    %v2393 = vpack.c.bf16 %v2387, %v2381
    %v2394 = vpack.c.bf16 %v2388, %v2382
    %v2395 = vld [vmem:[#allocation8] sm:$0xf]
    %v2396 = vld [vmem:[#allocation8 + $0x4] sm:$0xf]
    %v2397 = vld [vmem:[#allocation8 + $0x8] sm:$0xf]
    %v2398 = vld [vmem:[#allocation8 + $0xc] sm:$0xf]
    %v2399 = vld [vmem:[#allocation8 + $0x10] sm:$0xf]
    %v2400 = vld [vmem:[#allocation8 + $0x14] sm:$0xf]
    %v2401 = vld [vmem:[#allocation8 + $0x18] sm:$0xf]
    %v2402 = vld [vmem:[#allocation8 + $0x1c] sm:$0xf]
    %v2403 = vld [vmem:[#allocation8 + $0x20] sm:$0xf]
    %v2404 = vld [vmem:[#allocation8 + $0x24] sm:$0xf]
    %v2405 = vld [vmem:[#allocation8 + $0x28] sm:$0xf]
    %v2406 = vld [vmem:[#allocation8 + $0x2c] sm:$0xf]
    %v2407 = vld [vmem:[#allocation8 + $0x30] sm:$0xf]
    %v2408 = vld [vmem:[#allocation8 + $0x34] sm:$0xf]
    %v2409 = vld [vmem:[#allocation8 + $0x38] sm:$0xf]
    %v2410 = vld [vmem:[#allocation8 + $0x3c] sm:$0xf]
    %v2411 = vld [vmem:[#allocation8 + $0x40] sm:$0xf]
    %v2412 = vld [vmem:[#allocation8 + $0x44] sm:$0xf]
    %v2413 = vld [vmem:[#allocation8 + $0x48] sm:$0xf]
    %v2414 = vld [vmem:[#allocation8 + $0x4c] sm:$0xf]
    %v2415 = vld [vmem:[#allocation8 + $0x50] sm:$0xf]
    %v2416 = vld [vmem:[#allocation8 + $0x54] sm:$0xf]
    %v2417 = vld [vmem:[#allocation8 + $0x58] sm:$0xf]
    %v2418 = vld [vmem:[#allocation8 + $0x5c] sm:$0xf]
    %v2419 = vld [vmem:[#allocation8 + $0x60] sm:$0xf]
    %v2420 = vld [vmem:[#allocation8 + $0x64] sm:$0xf]
    %v2421 = vld [vmem:[#allocation8 + $0x68] sm:$0xf]
    %v2422 = vld [vmem:[#allocation8 + $0x6c] sm:$0xf]
    %v2423 = vld [vmem:[#allocation8 + $0x70] sm:$0xf]
    %v2424 = vld [vmem:[#allocation8 + $0x74] sm:$0xf]
    %v2425 = vld [vmem:[#allocation8 + $0x78] sm:$0xf]
    %v2426 = vld [vmem:[#allocation8 + $0x7c] sm:$0xf]
    %v2427 = vld [vmem:[#allocation8 + $0x80] sm:$0xf]
    %v2428 = vld [vmem:[#allocation8 + $0x84] sm:$0xf]
    %v2429 = vld [vmem:[#allocation8 + $0x88] sm:$0xf]
    %v2430 = vld [vmem:[#allocation8 + $0x8c] sm:$0xf]
    %v2431 = vld [vmem:[#allocation8 + $0x90] sm:$0xf]
    %v2432 = vld [vmem:[#allocation8 + $0x94] sm:$0xf]
    %v2433 = vld [vmem:[#allocation8 + $0x98] sm:$0xf]
    %v2434 = vld [vmem:[#allocation8 + $0x9c] sm:$0xf]
    %v2435 = vld [vmem:[#allocation8 + $0xa0] sm:$0xf]
    %v2436 = vld [vmem:[#allocation8 + $0xa4] sm:$0xf]
    %v2437 = vld [vmem:[#allocation8 + $0xa8] sm:$0xf]
    %v2438 = vld [vmem:[#allocation8 + $0xac] sm:$0xf]
    %v2439 = vld [vmem:[#allocation8 + $0xb0] sm:$0xf]
    %v2440 = vld [vmem:[#allocation8 + $0xb4] sm:$0xf]
    %v2441 = vld [vmem:[#allocation8 + $0xb8] sm:$0xf]
    %v2442 = vld [vmem:[#allocation8 + $0xbc] sm:$0xf]
    %v2443 = vld [vmem:[#allocation8 + $0xc0] sm:$0xf]
    %v2444 = vld [vmem:[#allocation8 + $0xc4] sm:$0xf]
    %v2445 = vld [vmem:[#allocation8 + $0xc8] sm:$0xf]
    %v2446 = vld [vmem:[#allocation8 + $0xcc] sm:$0xf]
    %v2447 = vld [vmem:[#allocation8 + $0xd0] sm:$0xf]
    %v2448 = vld [vmem:[#allocation8 + $0xd4] sm:$0xf]
    %v2449 = vld [vmem:[#allocation8 + $0xd8] sm:$0xf]
    %v2450 = vld [vmem:[#allocation8 + $0xdc] sm:$0xf]
    %v2451 = vld [vmem:[#allocation8 + $0xe0] sm:$0xf]
    %v2452 = vld [vmem:[#allocation8 + $0xe4] sm:$0xf]
    %v2453 = vld [vmem:[#allocation8 + $0xe8] sm:$0xf]
    %v2454 = vld [vmem:[#allocation8 + $0xec] sm:$0xf]
    %v2455 = vld [vmem:[#allocation8 + $0xf0] sm:$0xf]
    %v2456 = vld [vmem:[#allocation8 + $0xf4] sm:$0xf]
    %v2457 = vld [vmem:[#allocation8 + $0xf8] sm:$0xf]
    %v2458 = vld [vmem:[#allocation8 + $0xfc] sm:$0xf]
    %v2459 = vld [vmem:[#allocation8 + $0x100] sm:$0xf]
    %v2460 = vld [vmem:[#allocation8 + $0x104] sm:$0xf]
    %v2461 = vld [vmem:[#allocation8 + $0x108] sm:$0xf]
    %v2462 = vld [vmem:[#allocation8 + $0x10c] sm:$0xf]
    %v2463 = vld [vmem:[#allocation8 + $0x110] sm:$0xf]
    %v2464 = vld [vmem:[#allocation8 + $0x114] sm:$0xf]
    %v2465 = vld [vmem:[#allocation8 + $0x118] sm:$0xf]
    %v2466 = vld [vmem:[#allocation8 + $0x11c] sm:$0xf]
    %v2467 = vld [vmem:[#allocation8 + $0x120] sm:$0xf]
    %v2468 = vld [vmem:[#allocation8 + $0x124] sm:$0xf]
    %v2469 = vld [vmem:[#allocation8 + $0x128] sm:$0xf]
    %v2470 = vld [vmem:[#allocation8 + $0x12c] sm:$0xf]
    %v2471 = vld [vmem:[#allocation8 + $0x130] sm:$0xf]
    %v2472 = vld [vmem:[#allocation8 + $0x134] sm:$0xf]
    %v2473 = vld [vmem:[#allocation8 + $0x138] sm:$0xf]
    %v2474 = vld [vmem:[#allocation8 + $0x13c] sm:$0xf]
    %v2475 = vld [vmem:[#allocation8 + $0x140] sm:$0xf]
    %v2476 = vld [vmem:[#allocation8 + $0x144] sm:$0xf]
    %v2477 = vld [vmem:[#allocation8 + $0x148] sm:$0xf]
    %v2478 = vld [vmem:[#allocation8 + $0x14c] sm:$0xf]
    %v2479 = vld [vmem:[#allocation8 + $0x150] sm:$0xf]
    %v2480 = vld [vmem:[#allocation8 + $0x154] sm:$0xf]
    %v2481 = vld [vmem:[#allocation8 + $0x158] sm:$0xf]
    %v2482 = vld [vmem:[#allocation8 + $0x15c] sm:$0xf]
    %v2483 = vld [vmem:[#allocation8 + $0x160] sm:$0xf]
    %v2484 = vld [vmem:[#allocation8 + $0x164] sm:$0xf]
    %v2485 = vld [vmem:[#allocation8 + $0x168] sm:$0xf]
    %v2486 = vld [vmem:[#allocation8 + $0x16c] sm:$0xf]
    %v2487 = vld [vmem:[#allocation8 + $0x170] sm:$0xf]
    %v2488 = vld [vmem:[#allocation8 + $0x174] sm:$0xf]
    %v2489 = vld [vmem:[#allocation8 + $0x178] sm:$0xf]
    %v2490 = vld [vmem:[#allocation8 + $0x17c] sm:$0xf]
    %v2491 = vld [vmem:[#allocation10] sm:$0x1]
    %v2493 = vperm.slane %v2491, 0
    %v2591 = vunpack.c.l.b16 %v2395
    %v2592 = vunpack.c.l.b16 %v2396
    %v2593 = vunpack.c.l.b16 %v2397
    %v2594 = vunpack.c.l.b16 %v2398
    %v2595 = vunpack.c.l.b16 %v2399
    %v2596 = vunpack.c.l.b16 %v2400
    %v2597 = vunpack.c.l.b16 %v2401
    %v2598 = vunpack.c.l.b16 %v2402
    %v2599 = vunpack.c.l.b16 %v2403
    %v2600 = vunpack.c.l.b16 %v2404
    %v2601 = vunpack.c.l.b16 %v2405
    %v2602 = vunpack.c.l.b16 %v2406
    %v2603 = vunpack.c.l.b16 %v2407
    %v2604 = vunpack.c.l.b16 %v2408
    %v2605 = vunpack.c.l.b16 %v2409
    %v2606 = vunpack.c.l.b16 %v2410
    %v2607 = vunpack.c.l.b16 %v2411
    %v2608 = vunpack.c.l.b16 %v2412
    %v2609 = vunpack.c.l.b16 %v2413
    %v2610 = vunpack.c.l.b16 %v2414
    %v2611 = vunpack.c.l.b16 %v2415
    %v2612 = vunpack.c.l.b16 %v2416
    %v2613 = vunpack.c.l.b16 %v2417
    %v2614 = vunpack.c.l.b16 %v2418
    %v2615 = vunpack.c.l.b16 %v2419
    %v2616 = vunpack.c.l.b16 %v2420
    %v2617 = vunpack.c.l.b16 %v2421
    %v2618 = vunpack.c.l.b16 %v2422
    %v2619 = vunpack.c.l.b16 %v2423
    %v2620 = vunpack.c.l.b16 %v2424
    %v2621 = vunpack.c.l.b16 %v2425
    %v2622 = vunpack.c.l.b16 %v2426
    %v2623 = vunpack.c.l.b16 %v2427
    %v2624 = vunpack.c.l.b16 %v2428
    %v2625 = vunpack.c.l.b16 %v2429
    %v2626 = vunpack.c.l.b16 %v2430
    %v2627 = vunpack.c.l.b16 %v2431
    %v2628 = vunpack.c.l.b16 %v2432
    %v2629 = vunpack.c.l.b16 %v2433
    %v2630 = vunpack.c.l.b16 %v2434
    %v2631 = vunpack.c.l.b16 %v2435
    %v2632 = vunpack.c.l.b16 %v2436
    %v2633 = vunpack.c.l.b16 %v2437
    %v2634 = vunpack.c.l.b16 %v2438
    %v2635 = vunpack.c.l.b16 %v2439
    %v2636 = vunpack.c.l.b16 %v2440
    %v2637 = vunpack.c.l.b16 %v2441
    %v2638 = vunpack.c.l.b16 %v2442
    %v2639 = vunpack.c.l.b16 %v2443
    %v2640 = vunpack.c.l.b16 %v2444
    %v2641 = vunpack.c.l.b16 %v2445
    %v2642 = vunpack.c.l.b16 %v2446
    %v2643 = vunpack.c.l.b16 %v2447
    %v2644 = vunpack.c.l.b16 %v2448
    %v2645 = vunpack.c.l.b16 %v2449
    %v2646 = vunpack.c.l.b16 %v2450
    %v2647 = vunpack.c.l.b16 %v2451
    %v2648 = vunpack.c.l.b16 %v2452
    %v2649 = vunpack.c.l.b16 %v2453
    %v2650 = vunpack.c.l.b16 %v2454
    %v2651 = vunpack.c.l.b16 %v2455
    %v2652 = vunpack.c.l.b16 %v2456
    %v2653 = vunpack.c.l.b16 %v2457
    %v2654 = vunpack.c.l.b16 %v2458
    %v2655 = vunpack.c.l.b16 %v2459
    %v2656 = vunpack.c.l.b16 %v2460
    %v2657 = vunpack.c.l.b16 %v2461
    %v2658 = vunpack.c.l.b16 %v2462
    %v2659 = vunpack.c.l.b16 %v2463
    %v2660 = vunpack.c.l.b16 %v2464
    %v2661 = vunpack.c.l.b16 %v2465
    %v2662 = vunpack.c.l.b16 %v2466
    %v2663 = vunpack.c.l.b16 %v2467
    %v2664 = vunpack.c.l.b16 %v2468
    %v2665 = vunpack.c.l.b16 %v2469
    %v2666 = vunpack.c.l.b16 %v2470
    %v2667 = vunpack.c.l.b16 %v2471
    %v2668 = vunpack.c.l.b16 %v2472
    %v2669 = vunpack.c.l.b16 %v2473
    %v2670 = vunpack.c.l.b16 %v2474
    %v2671 = vunpack.c.l.b16 %v2475
    %v2672 = vunpack.c.l.b16 %v2476
    %v2673 = vunpack.c.l.b16 %v2477
    %v2674 = vunpack.c.l.b16 %v2478
    %v2675 = vunpack.c.l.b16 %v2479
    %v2676 = vunpack.c.l.b16 %v2480
    %v2677 = vunpack.c.l.b16 %v2481
    %v2678 = vunpack.c.l.b16 %v2482
    %v2679 = vunpack.c.l.b16 %v2483
    %v2680 = vunpack.c.l.b16 %v2484
    %v2681 = vunpack.c.l.b16 %v2485
    %v2682 = vunpack.c.l.b16 %v2486
    %v2683 = vunpack.c.l.b16 %v2487
    %v2684 = vunpack.c.l.b16 %v2488
    %v2685 = vunpack.c.l.b16 %v2489
    %v2686 = vunpack.c.l.b16 %v2490
    %v2687 = vpack.c.b16 %v2592, %v2591
    %v2688 = vpack.c.b16 %v2594, %v2593
    %v2689 = vpack.c.b16 %v2596, %v2595
    %v2690 = vpack.c.b16 %v2598, %v2597
    %v2691 = vpack.c.b16 %v2600, %v2599
    %v2692 = vpack.c.b16 %v2602, %v2601
    %v2693 = vpack.c.b16 %v2604, %v2603
    %v2694 = vpack.c.b16 %v2606, %v2605
    %v2695 = vpack.c.b16 %v2608, %v2607
    %v2696 = vpack.c.b16 %v2610, %v2609
    %v2697 = vpack.c.b16 %v2612, %v2611
    %v2698 = vpack.c.b16 %v2614, %v2613
    %v2699 = vpack.c.b16 %v2616, %v2615
    %v2700 = vpack.c.b16 %v2618, %v2617
    %v2701 = vpack.c.b16 %v2620, %v2619
    %v2702 = vpack.c.b16 %v2622, %v2621
    %v2703 = vpack.c.b16 %v2624, %v2623
    %v2704 = vpack.c.b16 %v2626, %v2625
    %v2705 = vpack.c.b16 %v2628, %v2627
    %v2706 = vpack.c.b16 %v2630, %v2629
    %v2707 = vpack.c.b16 %v2632, %v2631
    %v2708 = vpack.c.b16 %v2634, %v2633
    %v2709 = vpack.c.b16 %v2636, %v2635
    %v2710 = vpack.c.b16 %v2638, %v2637
    %v2711 = vpack.c.b16 %v2640, %v2639
    %v2712 = vpack.c.b16 %v2642, %v2641
    %v2713 = vpack.c.b16 %v2644, %v2643
    %v2714 = vpack.c.b16 %v2646, %v2645
    %v2715 = vpack.c.b16 %v2648, %v2647
    %v2716 = vpack.c.b16 %v2650, %v2649
    %v2717 = vpack.c.b16 %v2652, %v2651
    %v2718 = vpack.c.b16 %v2654, %v2653
    %v2719 = vpack.c.b16 %v2656, %v2655
    %v2720 = vpack.c.b16 %v2658, %v2657
    %v2721 = vpack.c.b16 %v2660, %v2659
    %v2722 = vpack.c.b16 %v2662, %v2661
    %v2723 = vpack.c.b16 %v2664, %v2663
    %v2724 = vpack.c.b16 %v2666, %v2665
    %v2725 = vpack.c.b16 %v2668, %v2667
    %v2726 = vpack.c.b16 %v2670, %v2669
    %v2727 = vpack.c.b16 %v2672, %v2671
    %v2728 = vpack.c.b16 %v2674, %v2673
    %v2729 = vpack.c.b16 %v2676, %v2675
    %v2730 = vpack.c.b16 %v2678, %v2677
    %v2731 = vpack.c.b16 %v2680, %v2679
    %v2732 = vpack.c.b16 %v2682, %v2681
    %v2733 = vpack.c.b16 %v2684, %v2683
    %v2734 = vpack.c.b16 %v2686, %v2685
    %2783 = vmatpush.bf16.msra.mxu0 %v2694
    %2784 = vmatpush.bf16.msra.mxu0 %v2693
    %2785 = vmatpush.bf16.msra.mxu0 %v2692
    %2786 = vmatpush.bf16.msra.mxu0 %v2691
    %2787 = vmatpush.bf16.msra.mxu0 %v2690
    %2788 = vmatpush.bf16.msra.mxu0 %v2689
    %2789 = vmatpush.bf16.msra.mxu0 %v2688
    %2790 = vmatpush.bf16.msra.mxu0 %v2687
    %2791 = vmatmul.bf16.gmra.mxu0 %v2389
    %v2792 = vpop.f32.mrf.mxu0
    %v2793 = vadd.f32 %v2493, %v2792
    %v2794 = vpop.f32.mrf.mxu0
    %v2795 = vadd.f32 %v2493, %v2794
    %2796 = vdwg.mxu0
    %2797 = vmatpush.bf16.msra.mxu0 %v2702
    %2798 = vmatpush.bf16.msra.mxu0 %v2701
    %2799 = vmatpush.bf16.msra.mxu0 %v2700
    %2800 = vmatpush.bf16.msra.mxu0 %v2699
    %2801 = vmatpush.bf16.msra.mxu0 %v2698
    %2802 = vmatpush.bf16.msra.mxu0 %v2697
    %2803 = vmatpush.bf16.msra.mxu0 %v2696
    %2804 = vmatpush.bf16.msra.mxu0 %v2695
    %2805 = vmatmul.bf16.gmra.mxu0 %v2390
    %v2806 = vpop.f32.mrf.mxu0
    %v2807 = vadd.f32 %v2793, %v2806
    %v2808 = vpop.f32.mrf.mxu0
    %v2809 = vadd.f32 %v2795, %v2808
    %2810 = vdwg.mxu0
    %2811 = vmatpush.bf16.msra.mxu0 %v2710
    %2812 = vmatpush.bf16.msra.mxu0 %v2709
    %2813 = vmatpush.bf16.msra.mxu0 %v2708
    %2814 = vmatpush.bf16.msra.mxu0 %v2707
    %2815 = vmatpush.bf16.msra.mxu0 %v2706
    %2816 = vmatpush.bf16.msra.mxu0 %v2705
    %2817 = vmatpush.bf16.msra.mxu0 %v2704
    %2818 = vmatpush.bf16.msra.mxu0 %v2703
    %2819 = vmatmul.bf16.gmra.mxu0 %v2391
    %v2820 = vpop.f32.mrf.mxu0
    %v2821 = vadd.f32 %v2807, %v2820
    %v2822 = vpop.f32.mrf.mxu0
    %v2823 = vadd.f32 %v2809, %v2822
    %2824 = vdwg.mxu0
    %2825 = vmatpush.bf16.msra.mxu0 %v2718
    %2826 = vmatpush.bf16.msra.mxu0 %v2717
    %2827 = vmatpush.bf16.msra.mxu0 %v2716
    %2828 = vmatpush.bf16.msra.mxu0 %v2715
    %2829 = vmatpush.bf16.msra.mxu0 %v2714
    %2830 = vmatpush.bf16.msra.mxu0 %v2713
    %2831 = vmatpush.bf16.msra.mxu0 %v2712
    %2832 = vmatpush.bf16.msra.mxu0 %v2711
    %2833 = vmatmul.bf16.gmra.mxu0 %v2392
    %v2834 = vpop.f32.mrf.mxu0
    %v2835 = vadd.f32 %v2821, %v2834
    %v2836 = vpop.f32.mrf.mxu0
    %v2837 = vadd.f32 %v2823, %v2836
    %2838 = vdwg.mxu0
    %2839 = vmatpush.bf16.msra.mxu0 %v2726
    %2840 = vmatpush.bf16.msra.mxu0 %v2725
    %2841 = vmatpush.bf16.msra.mxu0 %v2724
    %2842 = vmatpush.bf16.msra.mxu0 %v2723
    %2843 = vmatpush.bf16.msra.mxu0 %v2722
    %2844 = vmatpush.bf16.msra.mxu0 %v2721
    %2845 = vmatpush.bf16.msra.mxu0 %v2720
    %2846 = vmatpush.bf16.msra.mxu0 %v2719
    %2847 = vmatmul.bf16.gmra.mxu0 %v2393
    %v2848 = vpop.f32.mrf.mxu0
    %v2849 = vadd.f32 %v2835, %v2848
    %v2850 = vpop.f32.mrf.mxu0
    %v2851 = vadd.f32 %v2837, %v2850
    %2852 = vdwg.mxu0
    %2853 = vmatpush.bf16.msra.mxu0 %v2734
    %2854 = vmatpush.bf16.msra.mxu0 %v2733
    %2855 = vmatpush.bf16.msra.mxu0 %v2732
    %2856 = vmatpush.bf16.msra.mxu0 %v2731
    %2857 = vmatpush.bf16.msra.mxu0 %v2730
    %2858 = vmatpush.bf16.msra.mxu0 %v2729
    %2859 = vmatpush.bf16.msra.mxu0 %v2728
    %2860 = vmatpush.bf16.msra.mxu0 %v2727
    %2861 = vmatmul.bf16.gmra.mxu0 %v2394
    %v2862 = vpop.f32.mrf.mxu0
    %v2863 = vadd.f32 %v2849, %v2862
    %v2864 = vpop.f32.mrf.mxu0
    %v2865 = vadd.f32 %v2851, %v2864
    %2866 = vdwg.mxu0
    %2867 = vst [vmem:[#allocation11] sm:$0xff] %v2863
    %2868 = vst [vmem:[#allocation11 + $0x8] sm:$0xff] %v2865
    // Predicated region
    $region42: #{tpu_custom_call.1} parent=1 // pred_check
      _
    $region43: #{tpu_custom_call.1} parent=1 // pred_check_branch
      %2870 = sbr.rel (0) target = $region45
    $region44: #{tpu_custom_call.1} parent=1 // pred_region
      %2872 = vsyncadd [#allocation4], 0
      %s2873 = sshll.u32 [#allocation11], 4
      %s2874 = int_to_ptr.vmem [resolvable:$true] %s2873
      %s2875 = sshll.u32 %s5, 4
      %s2876 = int_to_ptr.hbm [resolvable:$true] %s2875
      %2881 = dma.vmem_to_hbm [thread:$0]  %s2874, 256, %s2876, [#allocation4], 128, 128, 8
    $region45: #{tpu_custom_call.1} parent=1 // pred_fallthru
      _
    // Predicated region
    $region46: #{tpu_custom_call.1} parent=1 // pred_check
      _
    $region47: #{tpu_custom_call.1} parent=1 // pred_check_branch
      %2883 = sbr.rel (0) target = $region49
    $region48: #{tpu_custom_call.1} parent=1 // pred_region
      %2885 = dma.done [#allocation4], 256
    $region49: #{tpu_custom_call.1} parent=1 // pred_fallthru
      _
    %2886 = vsyncpa [#allocation3], 1
    %2887 = vsyncpa [#allocation6], 1
    %2888 = vsyncpa [#allocation9], 1
    %2889 = vsyncpa [#allocation4], 1

</llo_original>
